<compile_context>
chip_gen: v5e
topology: v5e:2x2
jax: 0.10.0
libtpu: 0.0.40
codegen_flags: <defaults>
</compile_context>

<pallas_src>
import jax
import jax.numpy as jnp
import numpy as np
from jax.experimental import pallas as pl
from jax.experimental.pallas import tpu as pltpu


def lstm_linear_kernel(x_ref, wih_ref, whh_ref, b_ref, wlin_ref, blin_ref,
                       y_ref):
    BT, I = x_ref.shape            # x: (B*T, I) batch-major rows (b*T + t)
    T = wlin_ref.shape[0]          # w_lin: (T, 1, H)
    B = BT // T
    H = whh_ref.shape[0]           # w_hh: (H, 4H), gate order (i, f, o, g)

    wih = wih_ref[...]             # (I, 4H) bf16
    whh = whh_ref[...]             # (H, 4H) bf16

    # Hoisted input projection: one big MXU dot for all T steps, bias folded in.
    x_flat = x_ref[...].astype(jnp.bfloat16)                   # (B*T, I)
    zx = jnp.dot(x_flat, wih, preferred_element_type=jnp.float32) + b_ref[...]
    zx3 = zx.reshape(B, T, 4 * H)                              # (B, T, 4H) f32

    # Loop-invariant activation vectors (built once): sigmoid on the leading
    # 3H lanes (i, f, o) via sigmoid(x) = 0.5*tanh(0.5*x) + 0.5, plain tanh on
    # the trailing H lanes (g) -> single tanh pass per step.
    lane = jax.lax.broadcasted_iota(jnp.int32, (B, 4 * H), 1)
    is_sig = lane < 3 * H
    scale = jnp.where(is_sig, 0.5, 1.0).astype(jnp.float32)    # (B, 4H)
    shift = jnp.where(is_sig, 0.5, 0.0).astype(jnp.float32)    # (B, 4H)

    h = jnp.zeros((B, H), jnp.float32)
    c = jnp.zeros((B, H), jnp.float32)
    acc = jnp.zeros((B, H), jnp.float32)

    # Statically unrolled recurrence (T is small); only the h @ w_hh dot, the
    # single tanh pass and a few VPU ops remain on the serial chain.
    for t in range(T):
        z = zx3[:, t] + jnp.dot(h.astype(jnp.bfloat16), whh,
                                preferred_element_type=jnp.float32)  # (B, 4H)
        act = jnp.tanh(z * scale) * scale + shift                     # 1 EUP pass

        i_g = act[:, 0 * H:1 * H]
        f_g = act[:, 1 * H:2 * H]
        o_g = act[:, 2 * H:3 * H]
        g_g = act[:, 3 * H:4 * H]

        c = f_g * c + i_g * g_g
        h = o_g * jnp.tanh(c)

        # Fused Linear: elementwise accumulate h_t * W_lin[t]; reduce at end.
        acc = acc + h * wlin_ref[t]                                   # (B, H)

    y = jnp.sum(acc, axis=-1, keepdims=True) + blin_ref[...]          # (B, 1)
    y_ref[...] = y.astype(y_ref.dtype)


def baseline_lstm_forward(x, params):
    """x: (B, T, I) batch-first, like the PyTorch module. Returns (B, 1)."""
    B, T, I = x.shape
    x_flat = x.reshape(B * T, I)   # contiguous reshape: free (no extra dispatch)

    vmem = lambda: pl.BlockSpec(memory_space=pltpu.MemorySpace.VMEM)
    return pl.pallas_call(
        lstm_linear_kernel,
        out_shape=jax.ShapeDtypeStruct((B, 1), x.dtype),
        in_specs=[vmem() for _ in range(6)],
        out_specs=vmem(),
    )(x_flat, params["w_ih"], params["w_hh"], params["b"],
      params["w_lin"], params["b_lin"])


def make_params(key, input_size, seq_len, n_hidden):
    """Deterministic PyTorch-style init (U[-1/sqrt(H), 1/sqrt(H)])."""
    H, I, T = n_hidden, input_size, seq_len
    ks = jax.random.split(key, 6)
    bound = 1.0 / np.sqrt(H)
    w_ih_t = jax.random.uniform(ks[0], (4 * H, I), jnp.float32, -bound, bound)
    w_hh_t = jax.random.uniform(ks[1], (4 * H, H), jnp.float32, -bound, bound)
    b_ih = jax.random.uniform(ks[2], (4 * H,), jnp.float32, -bound, bound)
    b_hh = jax.random.uniform(ks[3], (4 * H,), jnp.float32, -bound, bound)
    lbound = 1.0 / np.sqrt(H * T)
    w_lin_t = jax.random.uniform(ks[4], (1, H * T), jnp.float32, -lbound, lbound)
    b_lin = jax.random.uniform(ks[5], (1,), jnp.float32, -lbound, lbound)

    # PyTorch row-block gate order is (i, f, g, o); the kernel uses (i, f, o, g)
    # so the sigmoid gates occupy the contiguous leading 3H lanes.
    order = jnp.array([0, 1, 3, 2])

    def pack(w):  # (4H, in_dim) -> (in_dim, 4H), gate-major along the last axis
        w4 = w.reshape(4, H, -1)[order]                       # (4, H, in)
        return jnp.transpose(w4, (2, 0, 1)).reshape(-1, 4 * H)

    params = {
        # MXU operands pre-cast to bf16 once (f32 accumulation in-kernel).
        "w_ih": pack(w_ih_t).astype(jnp.bfloat16),              # (I, 4H) bf16
        "w_hh": pack(w_hh_t).astype(jnp.bfloat16),              # (H, 4H) bf16
        "b": (b_ih + b_hh).reshape(4, H)[order].reshape(1, 4 * H),  # (1, 4H) f32
        "w_lin": w_lin_t.reshape(T, 1, H),                      # (T, 1, H) f32
        "b_lin": b_lin.reshape(1, 1),                           # (1, 1)   f32
    }
    torch_like = (w_ih_t, w_hh_t, b_ih, b_hh, w_lin_t, b_lin)
    return params, torch_like


def reference_forward(x, torch_like):
    """Pure-JAX f32 re-implementation of the PyTorch forward (verification)."""
    w_ih, w_hh, b_ih, b_hh, w_lin, b_lin = torch_like
    B, T, I = x.shape
    H = w_hh.shape[1]

    def step(carry, x_t):
        h, c = carry
        gates = x_t @ w_ih.T + b_ih + h @ w_hh.T + b_hh
        i, f, g, o = jnp.split(gates, 4, axis=-1)
        i, f, o = jax.nn.sigmoid(i), jax.nn.sigmoid(f), jax.nn.sigmoid(o)
        g = jnp.tanh(g)
        c = f * c + i * g
        h = o * jnp.tanh(c)
        return (h, c), h

    with jax.default_matmul_precision("highest"):
        init = (jnp.zeros((B, H), jnp.float32), jnp.zeros((B, H), jnp.float32))
        _, hs = jax.lax.scan(step, init, jnp.transpose(x, (1, 0, 2)))
        lstm_out = jnp.transpose(hs, (1, 0, 2)).reshape(B, T * H)
        return lstm_out @ w_lin.T + b_lin


if __name__ == "__main__":
    B, T, I, H = 8, 8, 16, 32  # batch, seq_length, input_size, n_hidden

    key = jax.random.PRNGKey(0)
    kx, kp = jax.random.split(key)
    x = jax.random.normal(kx, (B, T, I), dtype=jnp.float32)
    params, torch_like = make_params(kp, I, T, H)

    y = baseline_lstm_forward(x, params)
    y = jax.block_until_ready(y)

    y_ref = reference_forward(x, torch_like)
    # Tolerance relaxed vs the pure-f32 reference because the kernel's MXU
    # operands are bf16 (f32 accumulation) per the performance review.
    np.testing.assert_allclose(np.asarray(y), np.asarray(y_ref),
                               rtol=2e-2, atol=2e-2)
    print("KERNEL_OK")
</pallas_src>

<mosaic_0001>
module attributes {stable_mosaic.version = 11 : i64} {
  func.func @lstm_linear_kernel(%arg0: memref<64x16xf32, #tpu.memory_space<vmem>>, %arg1: memref<16x128xbf16, #tpu.memory_space<vmem>>, %arg2: memref<32x128xbf16, #tpu.memory_space<vmem>>, %arg3: memref<1x128xf32, #tpu.memory_space<vmem>>, %arg4: memref<8x1x32xf32, #tpu.memory_space<vmem>>, %arg5: memref<1x1xf32, #tpu.memory_space<vmem>>, %arg6: memref<8x1xf32, #tpu.memory_space<vmem>>) attributes {dimension_semantics = [], scalar_prefetch = 0 : i64, scratch_operands = 0 : i64, tpu.core_type = #tpu.core_type<tc>} {
    %c0 = arith.constant 0 : index
    %c0_0 = arith.constant 0 : index
    %0 = vector.load %arg1[%c0, %c0_0] : memref<16x128xbf16, #tpu.memory_space<vmem>>, vector<16x128xbf16>
    %c0_1 = arith.constant 0 : index
    %c0_2 = arith.constant 0 : index
    %1 = vector.load %arg2[%c0_1, %c0_2] : memref<32x128xbf16, #tpu.memory_space<vmem>>, vector<32x128xbf16>
    %c0_3 = arith.constant 0 : index
    %c0_4 = arith.constant 0 : index
    %2 = vector.load %arg0[%c0_3, %c0_4] : memref<64x16xf32, #tpu.memory_space<vmem>>, vector<64x16xf32>
    %3 = arith.truncf %2 : vector<64x16xf32> to vector<64x16xbf16>
    %cst = arith.constant dense<0.000000e+00> : vector<64x128xf32>
    %4 = tpu.matmul %3, %0, %cst {dimension_numbers = #tpu.dot_dimension_numbers<[1], [0], [0], [1], [0, 0, 1, 1], [], []>} : vector<64x16xbf16>, vector<16x128xbf16>, vector<64x128xf32> -> vector<64x128xf32>
    %c0_5 = arith.constant 0 : index
    %c0_6 = arith.constant 0 : index
    %5 = vector.load %arg3[%c0_5, %c0_6] : memref<1x128xf32, #tpu.memory_space<vmem>>, vector<1x128xf32>
    %6 = vector.broadcast %5 : vector<1x128xf32> to vector<64x128xf32>
    %7 = arith.addf %4, %6 : vector<64x128xf32>
    %8 = vector.shape_cast %7 : vector<64x128xf32> to vector<8x8x128xf32>
    %9 = tpu.iota {dimensions = array<i32: 1>} : vector<8x128xi32>
    %c96_i32 = arith.constant 96 : i32
    %10 = vector.broadcast %c96_i32 : i32 to vector<8x128xi32>
    %11 = arith.cmpi slt, %9, %10 : vector<8x128xi32>
    %cst_7 = arith.constant 5.000000e-01 : f32
    %cst_8 = arith.constant 1.000000e+00 : f32
    %12 = vector.broadcast %cst_7 : f32 to vector<8x128xf32>
    %13 = vector.broadcast %cst_8 : f32 to vector<8x128xf32>
    %14 = arith.select %11, %12, %13 : vector<8x128xi1>, vector<8x128xf32>
    %cst_9 = arith.constant 5.000000e-01 : f32
    %cst_10 = arith.constant 0.000000e+00 : f32
    %15 = vector.broadcast %cst_9 : f32 to vector<8x128xf32>
    %16 = vector.broadcast %cst_10 : f32 to vector<8x128xf32>
    %17 = arith.select %11, %15, %16 : vector<8x128xi1>, vector<8x128xf32>
    %cst_11 = arith.constant 0.000000e+00 : f32
    %18 = vector.broadcast %cst_11 : f32 to vector<8x32xf32>
    %cst_12 = arith.constant 0.000000e+00 : f32
    %19 = vector.broadcast %cst_12 : f32 to vector<8x32xf32>
    %cst_13 = arith.constant 0.000000e+00 : f32
    %20 = vector.broadcast %cst_13 : f32 to vector<8x32xf32>
    %21 = vector.extract_strided_slice %8 {offsets = [0, 0, 0], sizes = [8, 1, 128], strides = [1, 1, 1]} : vector<8x8x128xf32> to vector<8x1x128xf32>
    %22 = vector.shape_cast %21 : vector<8x1x128xf32> to vector<8x128xf32>
    %23 = arith.truncf %18 : vector<8x32xf32> to vector<8x32xbf16>
    %cst_14 = arith.constant dense<0.000000e+00> : vector<8x128xf32>
    %24 = tpu.matmul %23, %1, %cst_14 {dimension_numbers = #tpu.dot_dimension_numbers<[1], [0], [0], [1], [0, 0, 1, 1], [], []>} : vector<8x32xbf16>, vector<32x128xbf16>, vector<8x128xf32> -> vector<8x128xf32>
    %25 = arith.addf %22, %24 : vector<8x128xf32>
    %26 = arith.mulf %25, %14 : vector<8x128xf32>
    %27 = math.tanh %26 : vector<8x128xf32>
    %28 = arith.mulf %27, %14 : vector<8x128xf32>
    %29 = arith.addf %28, %17 : vector<8x128xf32>
    %30 = vector.extract_strided_slice %29 {offsets = [0, 0], sizes = [8, 32], strides = [1, 1]} : vector<8x128xf32> to vector<8x32xf32>
    %31 = vector.extract_strided_slice %29 {offsets = [0, 32], sizes = [8, 32], strides = [1, 1]} : vector<8x128xf32> to vector<8x32xf32>
    %32 = vector.extract_strided_slice %29 {offsets = [0, 64], sizes = [8, 32], strides = [1, 1]} : vector<8x128xf32> to vector<8x32xf32>
    %33 = vector.extract_strided_slice %29 {offsets = [0, 96], sizes = [8, 32], strides = [1, 1]} : vector<8x128xf32> to vector<8x32xf32>
    %34 = arith.mulf %31, %19 : vector<8x32xf32>
    %35 = arith.mulf %30, %33 : vector<8x32xf32>
    %36 = arith.addf %34, %35 : vector<8x32xf32>
    %37 = math.tanh %36 : vector<8x32xf32>
    %38 = arith.mulf %32, %37 : vector<8x32xf32>
    %c0_15 = arith.constant 0 : index
    %c0_16 = arith.constant 0 : index
    %c0_17 = arith.constant 0 : index
    %39 = vector.load %arg4[%c0_15, %c0_16, %c0_17] : memref<8x1x32xf32, #tpu.memory_space<vmem>>, vector<1x1x32xf32>
    %40 = vector.shape_cast %39 : vector<1x1x32xf32> to vector<1x32xf32>
    %41 = vector.broadcast %40 : vector<1x32xf32> to vector<8x32xf32>
    %42 = arith.mulf %38, %41 : vector<8x32xf32>
    %43 = arith.addf %20, %42 : vector<8x32xf32>
    %44 = vector.extract_strided_slice %8 {offsets = [0, 1, 0], sizes = [8, 1, 128], strides = [1, 1, 1]} : vector<8x8x128xf32> to vector<8x1x128xf32>
    %45 = vector.shape_cast %44 : vector<8x1x128xf32> to vector<8x128xf32>
    %46 = arith.truncf %38 : vector<8x32xf32> to vector<8x32xbf16>
    %cst_18 = arith.constant dense<0.000000e+00> : vector<8x128xf32>
    %47 = tpu.matmul %46, %1, %cst_18 {dimension_numbers = #tpu.dot_dimension_numbers<[1], [0], [0], [1], [0, 0, 1, 1], [], []>} : vector<8x32xbf16>, vector<32x128xbf16>, vector<8x128xf32> -> vector<8x128xf32>
    %48 = arith.addf %45, %47 : vector<8x128xf32>
    %49 = arith.mulf %48, %14 : vector<8x128xf32>
    %50 = math.tanh %49 : vector<8x128xf32>
    %51 = arith.mulf %50, %14 : vector<8x128xf32>
    %52 = arith.addf %51, %17 : vector<8x128xf32>
    %53 = vector.extract_strided_slice %52 {offsets = [0, 0], sizes = [8, 32], strides = [1, 1]} : vector<8x128xf32> to vector<8x32xf32>
    %54 = vector.extract_strided_slice %52 {offsets = [0, 32], sizes = [8, 32], strides = [1, 1]} : vector<8x128xf32> to vector<8x32xf32>
    %55 = vector.extract_strided_slice %52 {offsets = [0, 64], sizes = [8, 32], strides = [1, 1]} : vector<8x128xf32> to vector<8x32xf32>
    %56 = vector.extract_strided_slice %52 {offsets = [0, 96], sizes = [8, 32], strides = [1, 1]} : vector<8x128xf32> to vector<8x32xf32>
    %57 = arith.mulf %54, %36 : vector<8x32xf32>
    %58 = arith.mulf %53, %56 : vector<8x32xf32>
    %59 = arith.addf %57, %58 : vector<8x32xf32>
    %60 = math.tanh %59 : vector<8x32xf32>
    %61 = arith.mulf %55, %60 : vector<8x32xf32>
    %c1 = arith.constant 1 : index
    %c0_19 = arith.constant 0 : index
    %c0_20 = arith.constant 0 : index
    %62 = vector.load %arg4[%c1, %c0_19, %c0_20] : memref<8x1x32xf32, #tpu.memory_space<vmem>>, vector<1x1x32xf32>
    %63 = vector.shape_cast %62 : vector<1x1x32xf32> to vector<1x32xf32>
    %64 = vector.broadcast %63 : vector<1x32xf32> to vector<8x32xf32>
    %65 = arith.mulf %61, %64 : vector<8x32xf32>
    %66 = arith.addf %43, %65 : vector<8x32xf32>
    %67 = vector.extract_strided_slice %8 {offsets = [0, 2, 0], sizes = [8, 1, 128], strides = [1, 1, 1]} : vector<8x8x128xf32> to vector<8x1x128xf32>
    %68 = vector.shape_cast %67 : vector<8x1x128xf32> to vector<8x128xf32>
    %69 = arith.truncf %61 : vector<8x32xf32> to vector<8x32xbf16>
    %cst_21 = arith.constant dense<0.000000e+00> : vector<8x128xf32>
    %70 = tpu.matmul %69, %1, %cst_21 {dimension_numbers = #tpu.dot_dimension_numbers<[1], [0], [0], [1], [0, 0, 1, 1], [], []>} : vector<8x32xbf16>, vector<32x128xbf16>, vector<8x128xf32> -> vector<8x128xf32>
    %71 = arith.addf %68, %70 : vector<8x128xf32>
    %72 = arith.mulf %71, %14 : vector<8x128xf32>
    %73 = math.tanh %72 : vector<8x128xf32>
    %74 = arith.mulf %73, %14 : vector<8x128xf32>
    %75 = arith.addf %74, %17 : vector<8x128xf32>
    %76 = vector.extract_strided_slice %75 {offsets = [0, 0], sizes = [8, 32], strides = [1, 1]} : vector<8x128xf32> to vector<8x32xf32>
    %77 = vector.extract_strided_slice %75 {offsets = [0, 32], sizes = [8, 32], strides = [1, 1]} : vector<8x128xf32> to vector<8x32xf32>
    %78 = vector.extract_strided_slice %75 {offsets = [0, 64], sizes = [8, 32], strides = [1, 1]} : vector<8x128xf32> to vector<8x32xf32>
    %79 = vector.extract_strided_slice %75 {offsets = [0, 96], sizes = [8, 32], strides = [1, 1]} : vector<8x128xf32> to vector<8x32xf32>
    %80 = arith.mulf %77, %59 : vector<8x32xf32>
    %81 = arith.mulf %76, %79 : vector<8x32xf32>
    %82 = arith.addf %80, %81 : vector<8x32xf32>
    %83 = math.tanh %82 : vector<8x32xf32>
    %84 = arith.mulf %78, %83 : vector<8x32xf32>
    %c2 = arith.constant 2 : index
    %c0_22 = arith.constant 0 : index
    %c0_23 = arith.constant 0 : index
    %85 = vector.load %arg4[%c2, %c0_22, %c0_23] : memref<8x1x32xf32, #tpu.memory_space<vmem>>, vector<1x1x32xf32>
    %86 = vector.shape_cast %85 : vector<1x1x32xf32> to vector<1x32xf32>
    %87 = vector.broadcast %86 : vector<1x32xf32> to vector<8x32xf32>
    %88 = arith.mulf %84, %87 : vector<8x32xf32>
    %89 = arith.addf %66, %88 : vector<8x32xf32>
    %90 = vector.extract_strided_slice %8 {offsets = [0, 3, 0], sizes = [8, 1, 128], strides = [1, 1, 1]} : vector<8x8x128xf32> to vector<8x1x128xf32>
    %91 = vector.shape_cast %90 : vector<8x1x128xf32> to vector<8x128xf32>
    %92 = arith.truncf %84 : vector<8x32xf32> to vector<8x32xbf16>
    %cst_24 = arith.constant dense<0.000000e+00> : vector<8x128xf32>
    %93 = tpu.matmul %92, %1, %cst_24 {dimension_numbers = #tpu.dot_dimension_numbers<[1], [0], [0], [1], [0, 0, 1, 1], [], []>} : vector<8x32xbf16>, vector<32x128xbf16>, vector<8x128xf32> -> vector<8x128xf32>
    %94 = arith.addf %91, %93 : vector<8x128xf32>
    %95 = arith.mulf %94, %14 : vector<8x128xf32>
    %96 = math.tanh %95 : vector<8x128xf32>
    %97 = arith.mulf %96, %14 : vector<8x128xf32>
    %98 = arith.addf %97, %17 : vector<8x128xf32>
    %99 = vector.extract_strided_slice %98 {offsets = [0, 0], sizes = [8, 32], strides = [1, 1]} : vector<8x128xf32> to vector<8x32xf32>
    %100 = vector.extract_strided_slice %98 {offsets = [0, 32], sizes = [8, 32], strides = [1, 1]} : vector<8x128xf32> to vector<8x32xf32>
    %101 = vector.extract_strided_slice %98 {offsets = [0, 64], sizes = [8, 32], strides = [1, 1]} : vector<8x128xf32> to vector<8x32xf32>
    %102 = vector.extract_strided_slice %98 {offsets = [0, 96], sizes = [8, 32], strides = [1, 1]} : vector<8x128xf32> to vector<8x32xf32>
    %103 = arith.mulf %100, %82 : vector<8x32xf32>
    %104 = arith.mulf %99, %102 : vector<8x32xf32>
    %105 = arith.addf %103, %104 : vector<8x32xf32>
    %106 = math.tanh %105 : vector<8x32xf32>
    %107 = arith.mulf %101, %106 : vector<8x32xf32>
    %c3 = arith.constant 3 : index
    %c0_25 = arith.constant 0 : index
    %c0_26 = arith.constant 0 : index
    %108 = vector.load %arg4[%c3, %c0_25, %c0_26] : memref<8x1x32xf32, #tpu.memory_space<vmem>>, vector<1x1x32xf32>
    %109 = vector.shape_cast %108 : vector<1x1x32xf32> to vector<1x32xf32>
    %110 = vector.broadcast %109 : vector<1x32xf32> to vector<8x32xf32>
    %111 = arith.mulf %107, %110 : vector<8x32xf32>
    %112 = arith.addf %89, %111 : vector<8x32xf32>
    %113 = vector.extract_strided_slice %8 {offsets = [0, 4, 0], sizes = [8, 1, 128], strides = [1, 1, 1]} : vector<8x8x128xf32> to vector<8x1x128xf32>
    %114 = vector.shape_cast %113 : vector<8x1x128xf32> to vector<8x128xf32>
    %115 = arith.truncf %107 : vector<8x32xf32> to vector<8x32xbf16>
    %cst_27 = arith.constant dense<0.000000e+00> : vector<8x128xf32>
    %116 = tpu.matmul %115, %1, %cst_27 {dimension_numbers = #tpu.dot_dimension_numbers<[1], [0], [0], [1], [0, 0, 1, 1], [], []>} : vector<8x32xbf16>, vector<32x128xbf16>, vector<8x128xf32> -> vector<8x128xf32>
    %117 = arith.addf %114, %116 : vector<8x128xf32>
    %118 = arith.mulf %117, %14 : vector<8x128xf32>
    %119 = math.tanh %118 : vector<8x128xf32>
    %120 = arith.mulf %119, %14 : vector<8x128xf32>
    %121 = arith.addf %120, %17 : vector<8x128xf32>
    %122 = vector.extract_strided_slice %121 {offsets = [0, 0], sizes = [8, 32], strides = [1, 1]} : vector<8x128xf32> to vector<8x32xf32>
    %123 = vector.extract_strided_slice %121 {offsets = [0, 32], sizes = [8, 32], strides = [1, 1]} : vector<8x128xf32> to vector<8x32xf32>
    %124 = vector.extract_strided_slice %121 {offsets = [0, 64], sizes = [8, 32], strides = [1, 1]} : vector<8x128xf32> to vector<8x32xf32>
    %125 = vector.extract_strided_slice %121 {offsets = [0, 96], sizes = [8, 32], strides = [1, 1]} : vector<8x128xf32> to vector<8x32xf32>
    %126 = arith.mulf %123, %105 : vector<8x32xf32>
    %127 = arith.mulf %122, %125 : vector<8x32xf32>
    %128 = arith.addf %126, %127 : vector<8x32xf32>
    %129 = math.tanh %128 : vector<8x32xf32>
    %130 = arith.mulf %124, %129 : vector<8x32xf32>
    %c4 = arith.constant 4 : index
    %c0_28 = arith.constant 0 : index
    %c0_29 = arith.constant 0 : index
    %131 = vector.load %arg4[%c4, %c0_28, %c0_29] : memref<8x1x32xf32, #tpu.memory_space<vmem>>, vector<1x1x32xf32>
    %132 = vector.shape_cast %131 : vector<1x1x32xf32> to vector<1x32xf32>
    %133 = vector.broadcast %132 : vector<1x32xf32> to vector<8x32xf32>
    %134 = arith.mulf %130, %133 : vector<8x32xf32>
    %135 = arith.addf %112, %134 : vector<8x32xf32>
    %136 = vector.extract_strided_slice %8 {offsets = [0, 5, 0], sizes = [8, 1, 128], strides = [1, 1, 1]} : vector<8x8x128xf32> to vector<8x1x128xf32>
    %137 = vector.shape_cast %136 : vector<8x1x128xf32> to vector<8x128xf32>
    %138 = arith.truncf %130 : vector<8x32xf32> to vector<8x32xbf16>
    %cst_30 = arith.constant dense<0.000000e+00> : vector<8x128xf32>
    %139 = tpu.matmul %138, %1, %cst_30 {dimension_numbers = #tpu.dot_dimension_numbers<[1], [0], [0], [1], [0, 0, 1, 1], [], []>} : vector<8x32xbf16>, vector<32x128xbf16>, vector<8x128xf32> -> vector<8x128xf32>
    %140 = arith.addf %137, %139 : vector<8x128xf32>
    %141 = arith.mulf %140, %14 : vector<8x128xf32>
    %142 = math.tanh %141 : vector<8x128xf32>
    %143 = arith.mulf %142, %14 : vector<8x128xf32>
    %144 = arith.addf %143, %17 : vector<8x128xf32>
    %145 = vector.extract_strided_slice %144 {offsets = [0, 0], sizes = [8, 32], strides = [1, 1]} : vector<8x128xf32> to vector<8x32xf32>
    %146 = vector.extract_strided_slice %144 {offsets = [0, 32], sizes = [8, 32], strides = [1, 1]} : vector<8x128xf32> to vector<8x32xf32>
    %147 = vector.extract_strided_slice %144 {offsets = [0, 64], sizes = [8, 32], strides = [1, 1]} : vector<8x128xf32> to vector<8x32xf32>
    %148 = vector.extract_strided_slice %144 {offsets = [0, 96], sizes = [8, 32], strides = [1, 1]} : vector<8x128xf32> to vector<8x32xf32>
    %149 = arith.mulf %146, %128 : vector<8x32xf32>
    %150 = arith.mulf %145, %148 : vector<8x32xf32>
    %151 = arith.addf %149, %150 : vector<8x32xf32>
    %152 = math.tanh %151 : vector<8x32xf32>
    %153 = arith.mulf %147, %152 : vector<8x32xf32>
    %c5 = arith.constant 5 : index
    %c0_31 = arith.constant 0 : index
    %c0_32 = arith.constant 0 : index
    %154 = vector.load %arg4[%c5, %c0_31, %c0_32] : memref<8x1x32xf32, #tpu.memory_space<vmem>>, vector<1x1x32xf32>
    %155 = vector.shape_cast %154 : vector<1x1x32xf32> to vector<1x32xf32>
    %156 = vector.broadcast %155 : vector<1x32xf32> to vector<8x32xf32>
    %157 = arith.mulf %153, %156 : vector<8x32xf32>
    %158 = arith.addf %135, %157 : vector<8x32xf32>
    %159 = vector.extract_strided_slice %8 {offsets = [0, 6, 0], sizes = [8, 1, 128], strides = [1, 1, 1]} : vector<8x8x128xf32> to vector<8x1x128xf32>
    %160 = vector.shape_cast %159 : vector<8x1x128xf32> to vector<8x128xf32>
    %161 = arith.truncf %153 : vector<8x32xf32> to vector<8x32xbf16>
    %cst_33 = arith.constant dense<0.000000e+00> : vector<8x128xf32>
    %162 = tpu.matmul %161, %1, %cst_33 {dimension_numbers = #tpu.dot_dimension_numbers<[1], [0], [0], [1], [0, 0, 1, 1], [], []>} : vector<8x32xbf16>, vector<32x128xbf16>, vector<8x128xf32> -> vector<8x128xf32>
    %163 = arith.addf %160, %162 : vector<8x128xf32>
    %164 = arith.mulf %163, %14 : vector<8x128xf32>
    %165 = math.tanh %164 : vector<8x128xf32>
    %166 = arith.mulf %165, %14 : vector<8x128xf32>
    %167 = arith.addf %166, %17 : vector<8x128xf32>
    %168 = vector.extract_strided_slice %167 {offsets = [0, 0], sizes = [8, 32], strides = [1, 1]} : vector<8x128xf32> to vector<8x32xf32>
    %169 = vector.extract_strided_slice %167 {offsets = [0, 32], sizes = [8, 32], strides = [1, 1]} : vector<8x128xf32> to vector<8x32xf32>
    %170 = vector.extract_strided_slice %167 {offsets = [0, 64], sizes = [8, 32], strides = [1, 1]} : vector<8x128xf32> to vector<8x32xf32>
    %171 = vector.extract_strided_slice %167 {offsets = [0, 96], sizes = [8, 32], strides = [1, 1]} : vector<8x128xf32> to vector<8x32xf32>
    %172 = arith.mulf %169, %151 : vector<8x32xf32>
    %173 = arith.mulf %168, %171 : vector<8x32xf32>
    %174 = arith.addf %172, %173 : vector<8x32xf32>
    %175 = math.tanh %174 : vector<8x32xf32>
    %176 = arith.mulf %170, %175 : vector<8x32xf32>
    %c6 = arith.constant 6 : index
    %c0_34 = arith.constant 0 : index
    %c0_35 = arith.constant 0 : index
    %177 = vector.load %arg4[%c6, %c0_34, %c0_35] : memref<8x1x32xf32, #tpu.memory_space<vmem>>, vector<1x1x32xf32>
    %178 = vector.shape_cast %177 : vector<1x1x32xf32> to vector<1x32xf32>
    %179 = vector.broadcast %178 : vector<1x32xf32> to vector<8x32xf32>
    %180 = arith.mulf %176, %179 : vector<8x32xf32>
    %181 = arith.addf %158, %180 : vector<8x32xf32>
    %182 = vector.extract_strided_slice %8 {offsets = [0, 7, 0], sizes = [8, 1, 128], strides = [1, 1, 1]} : vector<8x8x128xf32> to vector<8x1x128xf32>
    %183 = vector.shape_cast %182 : vector<8x1x128xf32> to vector<8x128xf32>
    %184 = arith.truncf %176 : vector<8x32xf32> to vector<8x32xbf16>
    %cst_36 = arith.constant dense<0.000000e+00> : vector<8x128xf32>
    %185 = tpu.matmul %184, %1, %cst_36 {dimension_numbers = #tpu.dot_dimension_numbers<[1], [0], [0], [1], [0, 0, 1, 1], [], []>} : vector<8x32xbf16>, vector<32x128xbf16>, vector<8x128xf32> -> vector<8x128xf32>
    %186 = arith.addf %183, %185 : vector<8x128xf32>
    %187 = arith.mulf %186, %14 : vector<8x128xf32>
    %188 = math.tanh %187 : vector<8x128xf32>
    %189 = arith.mulf %188, %14 : vector<8x128xf32>
    %190 = arith.addf %189, %17 : vector<8x128xf32>
    %191 = vector.extract_strided_slice %190 {offsets = [0, 0], sizes = [8, 32], strides = [1, 1]} : vector<8x128xf32> to vector<8x32xf32>
    %192 = vector.extract_strided_slice %190 {offsets = [0, 32], sizes = [8, 32], strides = [1, 1]} : vector<8x128xf32> to vector<8x32xf32>
    %193 = vector.extract_strided_slice %190 {offsets = [0, 64], sizes = [8, 32], strides = [1, 1]} : vector<8x128xf32> to vector<8x32xf32>
    %194 = vector.extract_strided_slice %190 {offsets = [0, 96], sizes = [8, 32], strides = [1, 1]} : vector<8x128xf32> to vector<8x32xf32>
    %195 = arith.mulf %192, %174 : vector<8x32xf32>
    %196 = arith.mulf %191, %194 : vector<8x32xf32>
    %197 = arith.addf %195, %196 : vector<8x32xf32>
    %198 = math.tanh %197 : vector<8x32xf32>
    %199 = arith.mulf %193, %198 : vector<8x32xf32>
    %c7 = arith.constant 7 : index
    %c0_37 = arith.constant 0 : index
    %c0_38 = arith.constant 0 : index
    %200 = vector.load %arg4[%c7, %c0_37, %c0_38] : memref<8x1x32xf32, #tpu.memory_space<vmem>>, vector<1x1x32xf32>
    %201 = vector.shape_cast %200 : vector<1x1x32xf32> to vector<1x32xf32>
    %202 = vector.broadcast %201 : vector<1x32xf32> to vector<8x32xf32>
    %203 = arith.mulf %199, %202 : vector<8x32xf32>
    %204 = arith.addf %181, %203 : vector<8x32xf32>
    %cst_39 = arith.constant dense<0.000000e+00> : vector<8xf32>
    %205 = vector.multi_reduction <add>, %204, %cst_39 [1] : vector<8x32xf32> to vector<8xf32>
    %206 = vector.shape_cast %205 : vector<8xf32> to vector<8x1xf32>
    %c0_40 = arith.constant 0 : index
    %c0_41 = arith.constant 0 : index
    %207 = vector.load %arg5[%c0_40, %c0_41] : memref<1x1xf32, #tpu.memory_space<vmem>>, vector<1x1xf32>
    %208 = vector.broadcast %207 : vector<1x1xf32> to vector<8x1xf32>
    %209 = arith.addf %206, %208 : vector<8x1xf32>
    %c0_42 = arith.constant 0 : index
    %c0_43 = arith.constant 0 : index
    %210 = vector.load %arg6[%c0_42, %c0_43] : memref<8x1xf32, #tpu.memory_space<vmem>>, vector<8x1xf32>
    tpu.vector_store %arg6[%c0_42, %c0_43], %209 {strides = array<i32>} : memref<8x1xf32, #tpu.memory_space<vmem>>, vector<8x1xf32>,
    return
  }
}

</mosaic_0001>

<llo_original>
// kernel: tpu_custom_call.1
$region0: #{tpu_custom_call.1}
  #allocation0 [shape = 'u32[]', space=smem, size = 0x4, offset = 0x4, fixed_abs, tag = 'smem constant byte address 0x4 - core index']
  #allocation1 [shape = 'u32[72,128]{1,0:T(1,128)}', space=vmem, size = 0x9000, scoped, tag = 'internal scratch']
  #allocation2 [shape = 'f32[1,1]{1,0:T(1,128)S(1)}', space=vmem, size = 0x200, scoped, tag = 'scoped memory for tpu_custom_call.1']
  %s0 = inlined_call_operand.vmem [shape: f32[64,16], index: 0, kind: input, shape index: {}]
  %s1 = inlined_call_operand.vmem [shape: bf16[16,128], index: 1, kind: input, shape index: {}]
  %s2 = inlined_call_operand.vmem [shape: bf16[32,128], index: 2, kind: input, shape index: {}]
  %s3 = inlined_call_operand.vmem [shape: f32[1,128], index: 3, kind: input, shape index: {}]
  %s4 = inlined_call_operand.vmem [shape: f32[8,1,32], index: 4, kind: input, shape index: {}]
  %s5 = inlined_call_operand.<no memory space> [shape: f32[1,1], index: 5, kind: input, shape index: {}]
  %s6 = inlined_call_operand.vmem [shape: f32[8,1], index: 6, kind: output, shape index: {}]
  %s7 = sld [smem:[#allocation0]]
  $region34: #{tpu_custom_call.1} parent=0
    _
  %s9 = ssub.s32 1, %s7
  %s10 = scalar_select 0, %s9, %s7
  %v11 = vstv %s5
  %12 = vst [vmem:[#allocation2] sm:$0x1] %v11
  // Predicated region
  $region2: #{tpu_custom_call.1} parent=0 // pred_check
    _
  $region3: #{tpu_custom_call.1} parent=0 // pred_check_branch
    %14 = sbr.rel (0) target = $region5
  $region4: #{tpu_custom_call.1} parent=0 // pred_region
    _
  $region5: #{tpu_custom_call.1} parent=0 // pred_fallthru
    _
  // Predicated region
  $region6: #{tpu_custom_call.1} parent=0 // pred_check
    _
  $region7: #{tpu_custom_call.1} parent=0 // pred_check_branch
    %16 = sbr.rel (0) target = $region9
  $region8: #{tpu_custom_call.1} parent=0 // pred_region
    _
  $region9: #{tpu_custom_call.1} parent=0 // pred_fallthru
    _
  // Predicated region
  $region10: #{tpu_custom_call.1} parent=0 // pred_check
    _
  $region11: #{tpu_custom_call.1} parent=0 // pred_check_branch
    %18 = sbr.rel (0) target = $region13
  $region12: #{tpu_custom_call.1} parent=0 // pred_region
    _
  $region13: #{tpu_custom_call.1} parent=0 // pred_fallthru
    _
  // Predicated region
  $region14: #{tpu_custom_call.1} parent=0 // pred_check
    _
  $region15: #{tpu_custom_call.1} parent=0 // pred_check_branch
    %20 = sbr.rel (0) target = $region17
  $region16: #{tpu_custom_call.1} parent=0 // pred_region
    _
  $region17: #{tpu_custom_call.1} parent=0 // pred_fallthru
    _
  // Predicated region
  $region18: #{tpu_custom_call.1} parent=0 // pred_check
    _
  $region19: #{tpu_custom_call.1} parent=0 // pred_check_branch
    %22 = sbr.rel (0) target = $region21
  $region20: #{tpu_custom_call.1} parent=0 // pred_region
    _
  $region21: #{tpu_custom_call.1} parent=0 // pred_fallthru
    _
  // Predicated region
  $region22: #{tpu_custom_call.1} parent=0 // pred_check
    _
  $region23: #{tpu_custom_call.1} parent=0 // pred_check_branch
    %24 = sbr.rel (0) target = $region25
  $region24: #{tpu_custom_call.1} parent=0 // pred_region
    _
  $region25: #{tpu_custom_call.1} parent=0 // pred_fallthru
    _
  %v26 = vld [vmem:[%s1] sm:$0xf]
  %v27 = vld [vmem:[%s1 + $0x4] sm:$0xf]
  %v28 = vld [vmem:[%s2] sm:$0xf]
  %v29 = vld [vmem:[%s2 + $0x4] sm:$0xf]
  %v30 = vld [vmem:[%s2 + $0x8] sm:$0xf]
  %v31 = vld [vmem:[%s2 + $0xc] sm:$0xf]
  %v32 = vld [vmem:[%s0] sm:$0xff]
  %v33 = vld [vmem:[%s0 + $0x8] sm:$0xff]
  %v34 = vld [vmem:[%s0 + $0x10] sm:$0xff]
  %v35 = vld [vmem:[%s0 + $0x18] sm:$0xff]
  %v36 = vld [vmem:[%s0 + $0x20] sm:$0xff]
  %v37 = vld [vmem:[%s0 + $0x28] sm:$0xff]
  %v38 = vld [vmem:[%s0 + $0x30] sm:$0xff]
  %v39 = vld [vmem:[%s0 + $0x38] sm:$0xff]
  %v40 = vpack.c.bf16 %v33, %v32
  %v41 = vpack.c.bf16 %v35, %v34
  %v42 = vpack.c.bf16 %v37, %v36
  %v43 = vpack.c.bf16 %v39, %v38
  %v44 = vld [vmem:[%s3] sm:$0x1]
  %v46 = vperm.slane %v44, 0
  %v50 = vunpack.c.l.b16 %v26
  %v51 = vunpack.c.l.b16 %v27
  %v52 = vpack.c.b16 %v51, %v50
  %vm54 = vcmask 130048
  %v56 = vsel %vm54, %v40, 0
  %v59 = vsel %vm54, %v41, 0
  %v62 = vsel %vm54, %v42, 0
  %v65 = vsel %vm54, %v43, 0
  %67 = vmatpush.bf16.msra.mxu0 0
  %68 = vmatpush.bf16.msra.mxu0 0
  %69 = vmatpush.bf16.msra.mxu0 0
  %70 = vmatpush.bf16.msra.mxu0 0
  %71 = vmatpush.bf16.msra.mxu0 0
  %72 = vmatpush.bf16.msra.mxu0 0
  %73 = vmatpush.bf16.msra.mxu0 0
  %74 = vmatpush.bf16.msra.mxu0 %v52
  %75 = vmatmul.bf16.gmra.mxu0 %v56
  %v76 = vpop.f32.mrf.mxu0
  %v77 = vadd.f32 %v46, %v76
  %v78 = vpop.f32.mrf.mxu0
  %v79 = vadd.f32 %v46, %v78
  %80 = vmatmul.bf16.gmra.mxu0 %v59
  %v81 = vpop.f32.mrf.mxu0
  %v82 = vadd.f32 %v46, %v81
  %v83 = vpop.f32.mrf.mxu0
  %v84 = vadd.f32 %v46, %v83
  %85 = vmatmul.bf16.gmra.mxu0 %v62
  %v86 = vpop.f32.mrf.mxu0
  %v87 = vadd.f32 %v46, %v86
  %v88 = vpop.f32.mrf.mxu0
  %v89 = vadd.f32 %v46, %v88
  %90 = vmatmul.bf16.gmra.mxu0 %v65
  %v91 = vpop.f32.mrf.mxu0
  %v92 = vadd.f32 %v46, %v91
  %v93 = vpop.f32.mrf.mxu0
  %v94 = vadd.f32 %v46, %v93
  %95 = vdwg.mxu0
  %v96 = vlaneseq
  %v97 = vand.u32 %v96, 127
  %vm98 = vcmp.lt.s32.totalorder %v97, 96
  %v99 = vsel %vm98, 0.5, 1.0
  %v100 = vsel %vm98, 0.5, 0.0
  %v105 = vunpack.c.l.b16 %v28
  %v106 = vunpack.c.l.b16 %v29
  %v107 = vunpack.c.l.b16 %v30
  %v108 = vunpack.c.l.b16 %v31
  %v109 = vpack.c.b16 %v106, %v105
  %v110 = vpack.c.b16 %v108, %v107
  %vm113 = vcmask 261120
  %v115 = vsel %vm113, 0, 0
  %117 = vmatpush.bf16.msra.mxu0 0
  %118 = vmatpush.bf16.msra.mxu0 0
  %119 = vmatpush.bf16.msra.mxu0 0
  %120 = vmatpush.bf16.msra.mxu0 0
  %121 = vmatpush.bf16.msra.mxu0 0
  %122 = vmatpush.bf16.msra.mxu0 0
  %123 = vmatpush.bf16.msra.mxu0 %v110
  %124 = vmatpush.bf16.msra.mxu0 %v109
  %125 = vmatmul.bf16.gmra.mxu0 %v115
  %v126 = vpop.f32.mrf.mxu0
  %v127 = vadd.f32 0.0, %v126
  %v128 = vpop.f32.mrf.mxu0
  %129 = vdwg.mxu0
  %v131 = vrot.slane %v127, 1
  %v132 = vrot.slane %v127, 2
  %v133 = vrot.slane %v127, 3
  %v134 = vrot.slane %v127, 4
  %v135 = vrot.slane %v127, 5
  %v136 = vrot.slane %v127, 6
  %v137 = vrot.slane %v127, 7
  %v146 = vadd.f32 %v77, %v127
  %v147 = vadd.f32 %v79, %v131
  %v148 = vadd.f32 %v82, %v132
  %v149 = vadd.f32 %v84, %v133
  %v150 = vadd.f32 %v87, %v134
  %v151 = vadd.f32 %v89, %v135
  %v152 = vadd.f32 %v92, %v136
  %v153 = vadd.f32 %v94, %v137
  %v154 = vmul.f32 %v146, %v99
  %v155 = vmul.f32 %v147, %v99
  %v156 = vmul.f32 %v148, %v99
  %v157 = vmul.f32 %v149, %v99
  %v158 = vmul.f32 %v150, %v99
  %v159 = vmul.f32 %v151, %v99
  %v160 = vmul.f32 %v152, %v99
  %v161 = vmul.f32 %v153, %v99
  %v162 = vtanh.pop %v154
  %v163 = vtanh.pop %v155
  %v164 = vtanh.pop %v156
  %v165 = vtanh.pop %v157
  %v166 = vtanh.pop %v158
  %v167 = vtanh.pop %v159
  %v168 = vtanh.pop %v160
  %v169 = vtanh.pop %v161
  %v170 = vmul.f32 %v162, %v99
  %v171 = vmul.f32 %v163, %v99
  %v172 = vmul.f32 %v164, %v99
  %v173 = vmul.f32 %v165, %v99
  %v174 = vmul.f32 %v166, %v99
  %v175 = vmul.f32 %v167, %v99
  %v176 = vmul.f32 %v168, %v99
  %v177 = vmul.f32 %v169, %v99
  %v178 = vadd.f32 %v170, %v100
  %v179 = vadd.f32 %v171, %v100
  %v180 = vadd.f32 %v172, %v100
  %v181 = vadd.f32 %v173, %v100
  %v182 = vadd.f32 %v174, %v100
  %v183 = vadd.f32 %v175, %v100
  %v184 = vadd.f32 %v176, %v100
  %v185 = vadd.f32 %v177, %v100
  %v186 = vmul.f32 %v178, 0.0
  %v187 = vmul.f32 %v179, 0.0
  %v188 = vmul.f32 %v180, 0.0
  %v189 = vmul.f32 %v181, 0.0
  %v190 = vmul.f32 %v182, 0.0
  %v191 = vmul.f32 %v183, 0.0
  %v192 = vmul.f32 %v184, 0.0
  %v193 = vmul.f32 %v185, 0.0
  %202 = vrot.lane.b32.xlu0 %v178, 32
  %v203 = vpop.permute.xlu0 %202
  %204 = vrot.lane.b32.xlu0 %v179, 32
  %v205 = vpop.permute.xlu0 %204
  %206 = vrot.lane.b32.xlu0 %v180, 32
  %v207 = vpop.permute.xlu0 %206
  %208 = vrot.lane.b32.xlu0 %v181, 32
  %v209 = vpop.permute.xlu0 %208
  %210 = vrot.lane.b32.xlu0 %v182, 32
  %v211 = vpop.permute.xlu0 %210
  %212 = vrot.lane.b32.xlu0 %v183, 32
  %v213 = vpop.permute.xlu0 %212
  %214 = vrot.lane.b32.xlu0 %v184, 32
  %v215 = vpop.permute.xlu0 %214
  %216 = vrot.lane.b32.xlu0 %v185, 32
  %v217 = vpop.permute.xlu0 %216
  %v226 = vmul.f32 %v178, %v203
  %v227 = vmul.f32 %v179, %v205
  %v228 = vmul.f32 %v180, %v207
  %v229 = vmul.f32 %v181, %v209
  %v230 = vmul.f32 %v182, %v211
  %v231 = vmul.f32 %v183, %v213
  %v232 = vmul.f32 %v184, %v215
  %v233 = vmul.f32 %v185, %v217
  %242 = vrot.lane.b32.xlu0 %v226, 32
  %v243 = vpop.permute.xlu0 %242
  %244 = vrot.lane.b32.xlu0 %v227, 32
  %v245 = vpop.permute.xlu0 %244
  %246 = vrot.lane.b32.xlu0 %v228, 32
  %v247 = vpop.permute.xlu0 %246
  %248 = vrot.lane.b32.xlu0 %v229, 32
  %v249 = vpop.permute.xlu0 %248
  %250 = vrot.lane.b32.xlu0 %v230, 32
  %v251 = vpop.permute.xlu0 %250
  %252 = vrot.lane.b32.xlu0 %v231, 32
  %v253 = vpop.permute.xlu0 %252
  %254 = vrot.lane.b32.xlu0 %v232, 32
  %v255 = vpop.permute.xlu0 %254
  %256 = vrot.lane.b32.xlu0 %v233, 32
  %v257 = vpop.permute.xlu0 %256
  %v266 = vadd.f32 %v186, %v243
  %v267 = vadd.f32 %v187, %v245
  %v268 = vadd.f32 %v188, %v247
  %v269 = vadd.f32 %v189, %v249
  %v270 = vadd.f32 %v190, %v251
  %v271 = vadd.f32 %v191, %v253
  %v272 = vadd.f32 %v192, %v255
  %v273 = vadd.f32 %v193, %v257
  %v274 = vtanh.pop %v266
  %v275 = vtanh.pop %v267
  %v276 = vtanh.pop %v268
  %v277 = vtanh.pop %v269
  %v278 = vtanh.pop %v270
  %v279 = vtanh.pop %v271
  %v280 = vtanh.pop %v272
  %v281 = vtanh.pop %v273
  %290 = vrot.lane.b32.xlu0 %v274, 32
  %v291 = vpop.permute.xlu0 %290
  %292 = vrot.lane.b32.xlu0 %v275, 32
  %v293 = vpop.permute.xlu0 %292
  %294 = vrot.lane.b32.xlu0 %v276, 32
  %v295 = vpop.permute.xlu0 %294
  %296 = vrot.lane.b32.xlu0 %v277, 32
  %v297 = vpop.permute.xlu0 %296
  %298 = vrot.lane.b32.xlu0 %v278, 32
  %v299 = vpop.permute.xlu0 %298
  %300 = vrot.lane.b32.xlu0 %v279, 32
  %v301 = vpop.permute.xlu0 %300
  %302 = vrot.lane.b32.xlu0 %v280, 32
  %v303 = vpop.permute.xlu0 %302
  %304 = vrot.lane.b32.xlu0 %v281, 32
  %v305 = vpop.permute.xlu0 %304
  %v314 = vmul.f32 %v178, %v291
  %v315 = vmul.f32 %v179, %v293
  %v316 = vmul.f32 %v180, %v295
  %v317 = vmul.f32 %v181, %v297
  %v318 = vmul.f32 %v182, %v299
  %v319 = vmul.f32 %v183, %v301
  %v320 = vmul.f32 %v184, %v303
  %v321 = vmul.f32 %v185, %v305
  %v322 = vld [vmem:[%s4] sm:$0x1]
  %v324 = vperm.slane %v322, 0
  %325 = vrot.lane.b32.xlu0 %v324, 64
  %v326 = vpop.permute.xlu0 %325
  %v328 = vmul.f32 %v314, %v326
  %v329 = vmul.f32 %v315, %v326
  %v330 = vmul.f32 %v316, %v326
  %v331 = vmul.f32 %v317, %v326
  %v332 = vmul.f32 %v318, %v326
  %v333 = vmul.f32 %v319, %v326
  %v334 = vmul.f32 %v320, %v326
  %v335 = vmul.f32 %v321, %v326
  %v336 = vadd.f32 %v328, 0.0
  %v337 = vadd.f32 %v329, 0.0
  %v338 = vadd.f32 %v330, 0.0
  %v339 = vadd.f32 %v331, 0.0
  %v340 = vadd.f32 %v332, 0.0
  %v341 = vadd.f32 %v333, 0.0
  %v342 = vadd.f32 %v334, 0.0
  %v343 = vadd.f32 %v335, 0.0
  %v344 = vpack.c.bf16 %v314, %v314
  %v345 = vpack.c.bf16 %v315, %v315
  %v346 = vpack.c.bf16 %v316, %v316
  %v347 = vpack.c.bf16 %v317, %v317
  %v348 = vpack.c.bf16 %v318, %v318
  %v349 = vpack.c.bf16 %v319, %v319
  %v350 = vpack.c.bf16 %v320, %v320
  %v351 = vpack.c.bf16 %v321, %v321
  %v360 = vunpack.c.l.b16 %v344
  %v361 = vunpack.c.l.b16 %v345
  %v362 = vunpack.c.l.b16 %v346
  %v363 = vunpack.c.l.b16 %v347
  %v364 = vunpack.c.l.b16 %v348
  %v365 = vunpack.c.l.b16 %v349
  %v366 = vunpack.c.l.b16 %v350
  %v367 = vunpack.c.l.b16 %v351
  %v368 = vrot.slane %v361, 7
  %vm369 = vcmask 1041409
  %v370 = vsel %vm369, %v368, %v360
  %v371 = vrot.slane %v362, 6
  %vm372 = vcmask 1042434
  %v373 = vsel %vm372, %v371, %v370
  %v374 = vrot.slane %v363, 5
  %vm375 = vcmask 1043459
  %v376 = vsel %vm375, %v374, %v373
  %v377 = vrot.slane %v364, 4
  %vm378 = vcmask 1044484
  %v379 = vsel %vm378, %v377, %v376
  %v380 = vrot.slane %v365, 3
  %vm381 = vcmask 1045509
  %v382 = vsel %vm381, %v380, %v379
  %v383 = vrot.slane %v366, 2
  %vm384 = vcmask 1046534
  %v385 = vsel %vm384, %v383, %v382
  %v386 = vrot.slane %v367, 1
  %vm387 = vcmask 1047559
  %v388 = vsel %vm387, %v386, %v385
  %v389 = vpack.c.b16 %v388, %v388
  %390 = vrot.lane.b32.xlu0 %v389, 64
  %v391 = vpop.permute.xlu0 %390
  %v393 = vsel %vm113, %v391, 0
  %395 = vmatpush.bf16.msra.mxu0 0
  %396 = vmatpush.bf16.msra.mxu0 0
  %397 = vmatpush.bf16.msra.mxu0 0
  %398 = vmatpush.bf16.msra.mxu0 0
  %399 = vmatpush.bf16.msra.mxu0 0
  %400 = vmatpush.bf16.msra.mxu0 0
  %401 = vmatpush.bf16.msra.mxu0 %v110
  %402 = vmatpush.bf16.msra.mxu0 %v109
  %403 = vmatmul.bf16.gmra.mxu0 %v393
  %v404 = vpop.f32.mrf.mxu0
  %v405 = vadd.f32 0.0, %v404
  %v406 = vpop.f32.mrf.mxu0
  %407 = vdwg.mxu0
  %v409 = vrot.slane %v405, 7
  %v410 = vrot.slane %v405, 1
  %v411 = vrot.slane %v405, 2
  %v412 = vrot.slane %v405, 3
  %v413 = vrot.slane %v405, 4
  %v414 = vrot.slane %v405, 5
  %v415 = vrot.slane %v405, 6
  %v424 = vadd.f32 %v77, %v409
  %v425 = vadd.f32 %v79, %v405
  %v426 = vadd.f32 %v82, %v410
  %v427 = vadd.f32 %v84, %v411
  %v428 = vadd.f32 %v87, %v412
  %v429 = vadd.f32 %v89, %v413
  %v430 = vadd.f32 %v92, %v414
  %v431 = vadd.f32 %v94, %v415
  %v432 = vmul.f32 %v424, %v99
  %v433 = vmul.f32 %v425, %v99
  %v434 = vmul.f32 %v426, %v99
  %v435 = vmul.f32 %v427, %v99
  %v436 = vmul.f32 %v428, %v99
  %v437 = vmul.f32 %v429, %v99
  %v438 = vmul.f32 %v430, %v99
  %v439 = vmul.f32 %v431, %v99
  %v440 = vtanh.pop %v432
  %v441 = vtanh.pop %v433
  %v442 = vtanh.pop %v434
  %v443 = vtanh.pop %v435
  %v444 = vtanh.pop %v436
  %v445 = vtanh.pop %v437
  %v446 = vtanh.pop %v438
  %v447 = vtanh.pop %v439
  %v448 = vmul.f32 %v440, %v99
  %v449 = vmul.f32 %v441, %v99
  %v450 = vmul.f32 %v442, %v99
  %v451 = vmul.f32 %v443, %v99
  %v452 = vmul.f32 %v444, %v99
  %v453 = vmul.f32 %v445, %v99
  %v454 = vmul.f32 %v446, %v99
  %v455 = vmul.f32 %v447, %v99
  %v456 = vadd.f32 %v448, %v100
  %v457 = vadd.f32 %v449, %v100
  %v458 = vadd.f32 %v450, %v100
  %v459 = vadd.f32 %v451, %v100
  %v460 = vadd.f32 %v452, %v100
  %v461 = vadd.f32 %v453, %v100
  %v462 = vadd.f32 %v454, %v100
  %v463 = vadd.f32 %v455, %v100
  %v472 = vrot.slane %v266, 7
  %v473 = vrot.slane %v267, 7
  %v474 = vrot.slane %v268, 7
  %v475 = vrot.slane %v269, 7
  %v476 = vrot.slane %v270, 7
  %v477 = vrot.slane %v271, 7
  %v478 = vrot.slane %v272, 7
  %v479 = vrot.slane %v273, 7
  %v488 = vmul.f32 %v456, %v472
  %v489 = vmul.f32 %v457, %v473
  %v490 = vmul.f32 %v458, %v474
  %v491 = vmul.f32 %v459, %v475
  %v492 = vmul.f32 %v460, %v476
  %v493 = vmul.f32 %v461, %v477
  %v494 = vmul.f32 %v462, %v478
  %v495 = vmul.f32 %v463, %v479
  %504 = vrot.lane.b32.xlu0 %v456, 32
  %v505 = vpop.permute.xlu0 %504
  %506 = vrot.lane.b32.xlu0 %v457, 32
  %v507 = vpop.permute.xlu0 %506
  %508 = vrot.lane.b32.xlu0 %v458, 32
  %v509 = vpop.permute.xlu0 %508
  %510 = vrot.lane.b32.xlu0 %v459, 32
  %v511 = vpop.permute.xlu0 %510
  %512 = vrot.lane.b32.xlu0 %v460, 32
  %v513 = vpop.permute.xlu0 %512
  %514 = vrot.lane.b32.xlu0 %v461, 32
  %v515 = vpop.permute.xlu0 %514
  %516 = vrot.lane.b32.xlu0 %v462, 32
  %v517 = vpop.permute.xlu0 %516
  %518 = vrot.lane.b32.xlu0 %v463, 32
  %v519 = vpop.permute.xlu0 %518
  %v528 = vmul.f32 %v456, %v505
  %v529 = vmul.f32 %v457, %v507
  %v530 = vmul.f32 %v458, %v509
  %v531 = vmul.f32 %v459, %v511
  %v532 = vmul.f32 %v460, %v513
  %v533 = vmul.f32 %v461, %v515
  %v534 = vmul.f32 %v462, %v517
  %v535 = vmul.f32 %v463, %v519
  %544 = vrot.lane.b32.xlu0 %v528, 32
  %v545 = vpop.permute.xlu0 %544
  %546 = vrot.lane.b32.xlu0 %v529, 32
  %v547 = vpop.permute.xlu0 %546
  %548 = vrot.lane.b32.xlu0 %v530, 32
  %v549 = vpop.permute.xlu0 %548
  %550 = vrot.lane.b32.xlu0 %v531, 32
  %v551 = vpop.permute.xlu0 %550
  %552 = vrot.lane.b32.xlu0 %v532, 32
  %v553 = vpop.permute.xlu0 %552
  %554 = vrot.lane.b32.xlu0 %v533, 32
  %v555 = vpop.permute.xlu0 %554
  %556 = vrot.lane.b32.xlu0 %v534, 32
  %v557 = vpop.permute.xlu0 %556
  %558 = vrot.lane.b32.xlu0 %v535, 32
  %v559 = vpop.permute.xlu0 %558
  %v568 = vadd.f32 %v488, %v545
  %v569 = vadd.f32 %v489, %v547
  %v570 = vadd.f32 %v490, %v549
  %v571 = vadd.f32 %v491, %v551
  %v572 = vadd.f32 %v492, %v553
  %v573 = vadd.f32 %v493, %v555
  %v574 = vadd.f32 %v494, %v557
  %v575 = vadd.f32 %v495, %v559
  %v576 = vtanh.pop %v568
  %v577 = vtanh.pop %v569
  %v578 = vtanh.pop %v570
  %v579 = vtanh.pop %v571
  %v580 = vtanh.pop %v572
  %v581 = vtanh.pop %v573
  %v582 = vtanh.pop %v574
  %v583 = vtanh.pop %v575
  %592 = vrot.lane.b32.xlu0 %v576, 32
  %v593 = vpop.permute.xlu0 %592
  %594 = vrot.lane.b32.xlu0 %v577, 32
  %v595 = vpop.permute.xlu0 %594
  %596 = vrot.lane.b32.xlu0 %v578, 32
  %v597 = vpop.permute.xlu0 %596
  %598 = vrot.lane.b32.xlu0 %v579, 32
  %v599 = vpop.permute.xlu0 %598
  %600 = vrot.lane.b32.xlu0 %v580, 32
  %v601 = vpop.permute.xlu0 %600
  %602 = vrot.lane.b32.xlu0 %v581, 32
  %v603 = vpop.permute.xlu0 %602
  %604 = vrot.lane.b32.xlu0 %v582, 32
  %v605 = vpop.permute.xlu0 %604
  %606 = vrot.lane.b32.xlu0 %v583, 32
  %v607 = vpop.permute.xlu0 %606
  %v616 = vmul.f32 %v456, %v593
  %v617 = vmul.f32 %v457, %v595
  %v618 = vmul.f32 %v458, %v597
  %v619 = vmul.f32 %v459, %v599
  %v620 = vmul.f32 %v460, %v601
  %v621 = vmul.f32 %v461, %v603
  %v622 = vmul.f32 %v462, %v605
  %v623 = vmul.f32 %v463, %v607
  %s624 = scalar_lea.vmem %s4, 1
  %v625 = vld [vmem:[%s624] sm:$0x1]
  %v627 = vperm.slane %v625, 0
  %628 = vrot.lane.b32.xlu0 %v627, 64
  %v629 = vpop.permute.xlu0 %628
  %v631 = vmul.f32 %v616, %v629
  %v632 = vmul.f32 %v617, %v629
  %v633 = vmul.f32 %v618, %v629
  %v634 = vmul.f32 %v619, %v629
  %v635 = vmul.f32 %v620, %v629
  %v636 = vmul.f32 %v621, %v629
  %v637 = vmul.f32 %v622, %v629
  %v638 = vmul.f32 %v623, %v629
  %v647 = vrot.slane %v631, 1
  %v648 = vrot.slane %v632, 1
  %v649 = vrot.slane %v633, 1
  %v650 = vrot.slane %v634, 1
  %v651 = vrot.slane %v635, 1
  %v652 = vrot.slane %v636, 1
  %v653 = vrot.slane %v637, 1
  %v654 = vrot.slane %v638, 1
  %v663 = vadd.f32 %v336, %v647
  %v664 = vadd.f32 %v337, %v648
  %v665 = vadd.f32 %v338, %v649
  %v666 = vadd.f32 %v339, %v650
  %v667 = vadd.f32 %v340, %v651
  %v668 = vadd.f32 %v341, %v652
  %v669 = vadd.f32 %v342, %v653
  %v670 = vadd.f32 %v343, %v654
  %v671 = vpack.c.bf16 %v616, %v616
  %v672 = vpack.c.bf16 %v617, %v617
  %v673 = vpack.c.bf16 %v618, %v618
  %v674 = vpack.c.bf16 %v619, %v619
  %v675 = vpack.c.bf16 %v620, %v620
  %v676 = vpack.c.bf16 %v621, %v621
  %v677 = vpack.c.bf16 %v622, %v622
  %v678 = vpack.c.bf16 %v623, %v623
  %v687 = vunpack.c.l.b16 %v671
  %v688 = vunpack.c.l.b16 %v672
  %v689 = vunpack.c.l.b16 %v673
  %v690 = vunpack.c.l.b16 %v674
  %v691 = vunpack.c.l.b16 %v675
  %v692 = vunpack.c.l.b16 %v676
  %v693 = vunpack.c.l.b16 %v677
  %v694 = vunpack.c.l.b16 %v678
  %v695 = vrot.slane %v687, 1
  %v696 = vsel %vm369, %v688, %v695
  %v697 = vrot.slane %v689, 7
  %v698 = vsel %vm372, %v697, %v696
  %v699 = vrot.slane %v690, 6
  %v700 = vsel %vm375, %v699, %v698
  %v701 = vrot.slane %v691, 5
  %v702 = vsel %vm378, %v701, %v700
  %v703 = vrot.slane %v692, 4
  %v704 = vsel %vm381, %v703, %v702
  %v705 = vrot.slane %v693, 3
  %v706 = vsel %vm384, %v705, %v704
  %v707 = vrot.slane %v694, 2
  %v708 = vsel %vm387, %v707, %v706
  %v709 = vpack.c.b16 %v708, %v708
  %710 = vrot.lane.b32.xlu0 %v709, 64
  %v711 = vpop.permute.xlu0 %710
  %v713 = vsel %vm113, %v711, 0
  %715 = vmatpush.bf16.msra.mxu0 0
  %716 = vmatpush.bf16.msra.mxu0 0
  %717 = vmatpush.bf16.msra.mxu0 0
  %718 = vmatpush.bf16.msra.mxu0 0
  %719 = vmatpush.bf16.msra.mxu0 0
  %720 = vmatpush.bf16.msra.mxu0 0
  %721 = vmatpush.bf16.msra.mxu0 %v110
  %722 = vmatpush.bf16.msra.mxu0 %v109
  %723 = vmatmul.bf16.gmra.mxu0 %v713
  %v724 = vpop.f32.mrf.mxu0
  %v725 = vadd.f32 0.0, %v724
  %v726 = vpop.f32.mrf.mxu0
  %727 = vdwg.mxu0
  %v729 = vrot.slane %v725, 6
  %v730 = vrot.slane %v725, 7
  %v731 = vrot.slane %v725, 1
  %v732 = vrot.slane %v725, 2
  %v733 = vrot.slane %v725, 3
  %v734 = vrot.slane %v725, 4
  %v735 = vrot.slane %v725, 5
  %v744 = vadd.f32 %v77, %v729
  %v745 = vadd.f32 %v79, %v730
  %v746 = vadd.f32 %v82, %v725
  %v747 = vadd.f32 %v84, %v731
  %v748 = vadd.f32 %v87, %v732
  %v749 = vadd.f32 %v89, %v733
  %v750 = vadd.f32 %v92, %v734
  %v751 = vadd.f32 %v94, %v735
  %v752 = vmul.f32 %v744, %v99
  %v753 = vmul.f32 %v745, %v99
  %v754 = vmul.f32 %v746, %v99
  %v755 = vmul.f32 %v747, %v99
  %v756 = vmul.f32 %v748, %v99
  %v757 = vmul.f32 %v749, %v99
  %v758 = vmul.f32 %v750, %v99
  %v759 = vmul.f32 %v751, %v99
  %v760 = vtanh.pop %v752
  %v761 = vtanh.pop %v753
  %v762 = vtanh.pop %v754
  %v763 = vtanh.pop %v755
  %v764 = vtanh.pop %v756
  %v765 = vtanh.pop %v757
  %v766 = vtanh.pop %v758
  %v767 = vtanh.pop %v759
  %v768 = vmul.f32 %v760, %v99
  %v769 = vmul.f32 %v761, %v99
  %v770 = vmul.f32 %v762, %v99
  %v771 = vmul.f32 %v763, %v99
  %v772 = vmul.f32 %v764, %v99
  %v773 = vmul.f32 %v765, %v99
  %v774 = vmul.f32 %v766, %v99
  %v775 = vmul.f32 %v767, %v99
  %v776 = vadd.f32 %v768, %v100
  %v777 = vadd.f32 %v769, %v100
  %v778 = vadd.f32 %v770, %v100
  %v779 = vadd.f32 %v771, %v100
  %v780 = vadd.f32 %v772, %v100
  %v781 = vadd.f32 %v773, %v100
  %v782 = vadd.f32 %v774, %v100
  %v783 = vadd.f32 %v775, %v100
  %v792 = vrot.slane %v568, 7
  %v793 = vrot.slane %v569, 7
  %v794 = vrot.slane %v570, 7
  %v795 = vrot.slane %v571, 7
  %v796 = vrot.slane %v572, 7
  %v797 = vrot.slane %v573, 7
  %v798 = vrot.slane %v574, 7
  %v799 = vrot.slane %v575, 7
  %v808 = vmul.f32 %v776, %v792
  %v809 = vmul.f32 %v777, %v793
  %v810 = vmul.f32 %v778, %v794
  %v811 = vmul.f32 %v779, %v795
  %v812 = vmul.f32 %v780, %v796
  %v813 = vmul.f32 %v781, %v797
  %v814 = vmul.f32 %v782, %v798
  %v815 = vmul.f32 %v783, %v799
  %824 = vrot.lane.b32.xlu0 %v776, 32
  %v825 = vpop.permute.xlu0 %824
  %826 = vrot.lane.b32.xlu0 %v777, 32
  %v827 = vpop.permute.xlu0 %826
  %828 = vrot.lane.b32.xlu0 %v778, 32
  %v829 = vpop.permute.xlu0 %828
  %830 = vrot.lane.b32.xlu0 %v779, 32
  %v831 = vpop.permute.xlu0 %830
  %832 = vrot.lane.b32.xlu0 %v780, 32
  %v833 = vpop.permute.xlu0 %832
  %834 = vrot.lane.b32.xlu0 %v781, 32
  %v835 = vpop.permute.xlu0 %834
  %836 = vrot.lane.b32.xlu0 %v782, 32
  %v837 = vpop.permute.xlu0 %836
  %838 = vrot.lane.b32.xlu0 %v783, 32
  %v839 = vpop.permute.xlu0 %838
  %v848 = vmul.f32 %v776, %v825
  %v849 = vmul.f32 %v777, %v827
  %v850 = vmul.f32 %v778, %v829
  %v851 = vmul.f32 %v779, %v831
  %v852 = vmul.f32 %v780, %v833
  %v853 = vmul.f32 %v781, %v835
  %v854 = vmul.f32 %v782, %v837
  %v855 = vmul.f32 %v783, %v839
  %864 = vrot.lane.b32.xlu0 %v848, 32
  %v865 = vpop.permute.xlu0 %864
  %866 = vrot.lane.b32.xlu0 %v849, 32
  %v867 = vpop.permute.xlu0 %866
  %868 = vrot.lane.b32.xlu0 %v850, 32
  %v869 = vpop.permute.xlu0 %868
  %870 = vrot.lane.b32.xlu0 %v851, 32
  %v871 = vpop.permute.xlu0 %870
  %872 = vrot.lane.b32.xlu0 %v852, 32
  %v873 = vpop.permute.xlu0 %872
  %874 = vrot.lane.b32.xlu0 %v853, 32
  %v875 = vpop.permute.xlu0 %874
  %876 = vrot.lane.b32.xlu0 %v854, 32
  %v877 = vpop.permute.xlu0 %876
  %878 = vrot.lane.b32.xlu0 %v855, 32
  %v879 = vpop.permute.xlu0 %878
  %v888 = vadd.f32 %v808, %v865
  %v889 = vadd.f32 %v809, %v867
  %v890 = vadd.f32 %v810, %v869
  %v891 = vadd.f32 %v811, %v871
  %v892 = vadd.f32 %v812, %v873
  %v893 = vadd.f32 %v813, %v875
  %v894 = vadd.f32 %v814, %v877
  %v895 = vadd.f32 %v815, %v879
  %v896 = vtanh.pop %v888
  %v897 = vtanh.pop %v889
  %v898 = vtanh.pop %v890
  %v899 = vtanh.pop %v891
  %v900 = vtanh.pop %v892
  %v901 = vtanh.pop %v893
  %v902 = vtanh.pop %v894
  %v903 = vtanh.pop %v895
  %912 = vrot.lane.b32.xlu0 %v896, 32
  %v913 = vpop.permute.xlu0 %912
  %914 = vrot.lane.b32.xlu0 %v897, 32
  %v915 = vpop.permute.xlu0 %914
  %916 = vrot.lane.b32.xlu0 %v898, 32
  %v917 = vpop.permute.xlu0 %916
  %918 = vrot.lane.b32.xlu0 %v899, 32
  %v919 = vpop.permute.xlu0 %918
  %920 = vrot.lane.b32.xlu0 %v900, 32
  %v921 = vpop.permute.xlu0 %920
  %922 = vrot.lane.b32.xlu0 %v901, 32
  %v923 = vpop.permute.xlu0 %922
  %924 = vrot.lane.b32.xlu0 %v902, 32
  %v925 = vpop.permute.xlu0 %924
  %926 = vrot.lane.b32.xlu0 %v903, 32
  %v927 = vpop.permute.xlu0 %926
  %v936 = vmul.f32 %v776, %v913
  %v937 = vmul.f32 %v777, %v915
  %v938 = vmul.f32 %v778, %v917
  %v939 = vmul.f32 %v779, %v919
  %v940 = vmul.f32 %v780, %v921
  %v941 = vmul.f32 %v781, %v923
  %v942 = vmul.f32 %v782, %v925
  %v943 = vmul.f32 %v783, %v927
  %s944 = scalar_lea.vmem %s4, 2
  %v945 = vld [vmem:[%s944] sm:$0x1]
  %v947 = vperm.slane %v945, 0
  %948 = vrot.lane.b32.xlu0 %v947, 64
  %v949 = vpop.permute.xlu0 %948
  %v951 = vmul.f32 %v936, %v949
  %v952 = vmul.f32 %v937, %v949
  %v953 = vmul.f32 %v938, %v949
  %v954 = vmul.f32 %v939, %v949
  %v955 = vmul.f32 %v940, %v949
  %v956 = vmul.f32 %v941, %v949
  %v957 = vmul.f32 %v942, %v949
  %v958 = vmul.f32 %v943, %v949
  %v967 = vrot.slane %v951, 2
  %v968 = vrot.slane %v952, 2
  %v969 = vrot.slane %v953, 2
  %v970 = vrot.slane %v954, 2
  %v971 = vrot.slane %v955, 2
  %v972 = vrot.slane %v956, 2
  %v973 = vrot.slane %v957, 2
  %v974 = vrot.slane %v958, 2
  %v983 = vadd.f32 %v663, %v967
  %v984 = vadd.f32 %v664, %v968
  %v985 = vadd.f32 %v665, %v969
  %v986 = vadd.f32 %v666, %v970
  %v987 = vadd.f32 %v667, %v971
  %v988 = vadd.f32 %v668, %v972
  %v989 = vadd.f32 %v669, %v973
  %v990 = vadd.f32 %v670, %v974
  %v991 = vpack.c.bf16 %v936, %v936
  %v992 = vpack.c.bf16 %v937, %v937
  %v993 = vpack.c.bf16 %v938, %v938
  %v994 = vpack.c.bf16 %v939, %v939
  %v995 = vpack.c.bf16 %v940, %v940
  %v996 = vpack.c.bf16 %v941, %v941
  %v997 = vpack.c.bf16 %v942, %v942
  %v998 = vpack.c.bf16 %v943, %v943
  %v1007 = vunpack.c.l.b16 %v991
  %v1008 = vunpack.c.l.b16 %v992
  %v1009 = vunpack.c.l.b16 %v993
  %v1010 = vunpack.c.l.b16 %v994
  %v1011 = vunpack.c.l.b16 %v995
  %v1012 = vunpack.c.l.b16 %v996
  %v1013 = vunpack.c.l.b16 %v997
  %v1014 = vunpack.c.l.b16 %v998
  %v1015 = vrot.slane %v1007, 2
  %v1016 = vrot.slane %v1008, 1
  %v1017 = vsel %vm369, %v1016, %v1015
  %v1018 = vsel %vm372, %v1009, %v1017
  %v1019 = vrot.slane %v1010, 7
  %v1020 = vsel %vm375, %v1019, %v1018
  %v1021 = vrot.slane %v1011, 6
  %v1022 = vsel %vm378, %v1021, %v1020
  %v1023 = vrot.slane %v1012, 5
  %v1024 = vsel %vm381, %v1023, %v1022
  %v1025 = vrot.slane %v1013, 4
  %v1026 = vsel %vm384, %v1025, %v1024
  %v1027 = vrot.slane %v1014, 3
  %v1028 = vsel %vm387, %v1027, %v1026
  %v1029 = vpack.c.b16 %v1028, %v1028
  %1030 = vrot.lane.b32.xlu0 %v1029, 64
  %v1031 = vpop.permute.xlu0 %1030
  %v1033 = vsel %vm113, %v1031, 0
  %1035 = vmatpush.bf16.msra.mxu0 0
  %1036 = vmatpush.bf16.msra.mxu0 0
  %1037 = vmatpush.bf16.msra.mxu0 0
  %1038 = vmatpush.bf16.msra.mxu0 0
  %1039 = vmatpush.bf16.msra.mxu0 0
  %1040 = vmatpush.bf16.msra.mxu0 0
  %1041 = vmatpush.bf16.msra.mxu0 %v110
  %1042 = vmatpush.bf16.msra.mxu0 %v109
  %1043 = vmatmul.bf16.gmra.mxu0 %v1033
  %v1044 = vpop.f32.mrf.mxu0
  %v1045 = vadd.f32 0.0, %v1044
  %v1046 = vpop.f32.mrf.mxu0
  %1047 = vdwg.mxu0
  %v1049 = vrot.slane %v1045, 5
  %v1050 = vrot.slane %v1045, 6
  %v1051 = vrot.slane %v1045, 7
  %v1052 = vrot.slane %v1045, 1
  %v1053 = vrot.slane %v1045, 2
  %v1054 = vrot.slane %v1045, 3
  %v1055 = vrot.slane %v1045, 4
  %v1064 = vadd.f32 %v77, %v1049
  %v1065 = vadd.f32 %v79, %v1050
  %v1066 = vadd.f32 %v82, %v1051
  %v1067 = vadd.f32 %v84, %v1045
  %v1068 = vadd.f32 %v87, %v1052
  %v1069 = vadd.f32 %v89, %v1053
  %v1070 = vadd.f32 %v92, %v1054
  %v1071 = vadd.f32 %v94, %v1055
  %v1072 = vmul.f32 %v1064, %v99
  %v1073 = vmul.f32 %v1065, %v99
  %v1074 = vmul.f32 %v1066, %v99
  %v1075 = vmul.f32 %v1067, %v99
  %v1076 = vmul.f32 %v1068, %v99
  %v1077 = vmul.f32 %v1069, %v99
  %v1078 = vmul.f32 %v1070, %v99
  %v1079 = vmul.f32 %v1071, %v99
  %v1080 = vtanh.pop %v1072
  %v1081 = vtanh.pop %v1073
  %v1082 = vtanh.pop %v1074
  %v1083 = vtanh.pop %v1075
  %v1084 = vtanh.pop %v1076
  %v1085 = vtanh.pop %v1077
  %v1086 = vtanh.pop %v1078
  %v1087 = vtanh.pop %v1079
  %v1088 = vmul.f32 %v1080, %v99
  %v1089 = vmul.f32 %v1081, %v99
  %v1090 = vmul.f32 %v1082, %v99
  %v1091 = vmul.f32 %v1083, %v99
  %v1092 = vmul.f32 %v1084, %v99
  %v1093 = vmul.f32 %v1085, %v99
  %v1094 = vmul.f32 %v1086, %v99
  %v1095 = vmul.f32 %v1087, %v99
  %v1096 = vadd.f32 %v1088, %v100
  %v1097 = vadd.f32 %v1089, %v100
  %v1098 = vadd.f32 %v1090, %v100
  %v1099 = vadd.f32 %v1091, %v100
  %v1100 = vadd.f32 %v1092, %v100
  %v1101 = vadd.f32 %v1093, %v100
  %v1102 = vadd.f32 %v1094, %v100
  %v1103 = vadd.f32 %v1095, %v100
  %v1112 = vrot.slane %v888, 7
  %v1113 = vrot.slane %v889, 7
  %v1114 = vrot.slane %v890, 7
  %v1115 = vrot.slane %v891, 7
  %v1116 = vrot.slane %v892, 7
  %v1117 = vrot.slane %v893, 7
  %v1118 = vrot.slane %v894, 7
  %v1119 = vrot.slane %v895, 7
  %v1128 = vmul.f32 %v1096, %v1112
  %v1129 = vmul.f32 %v1097, %v1113
  %v1130 = vmul.f32 %v1098, %v1114
  %v1131 = vmul.f32 %v1099, %v1115
  %v1132 = vmul.f32 %v1100, %v1116
  %v1133 = vmul.f32 %v1101, %v1117
  %v1134 = vmul.f32 %v1102, %v1118
  %v1135 = vmul.f32 %v1103, %v1119
  %1144 = vrot.lane.b32.xlu0 %v1096, 32
  %v1145 = vpop.permute.xlu0 %1144
  %1146 = vrot.lane.b32.xlu0 %v1097, 32
  %v1147 = vpop.permute.xlu0 %1146
  %1148 = vrot.lane.b32.xlu0 %v1098, 32
  %v1149 = vpop.permute.xlu0 %1148
  %1150 = vrot.lane.b32.xlu0 %v1099, 32
  %v1151 = vpop.permute.xlu0 %1150
  %1152 = vrot.lane.b32.xlu0 %v1100, 32
  %v1153 = vpop.permute.xlu0 %1152
  %1154 = vrot.lane.b32.xlu0 %v1101, 32
  %v1155 = vpop.permute.xlu0 %1154
  %1156 = vrot.lane.b32.xlu0 %v1102, 32
  %v1157 = vpop.permute.xlu0 %1156
  %1158 = vrot.lane.b32.xlu0 %v1103, 32
  %v1159 = vpop.permute.xlu0 %1158
  %v1168 = vmul.f32 %v1096, %v1145
  %v1169 = vmul.f32 %v1097, %v1147
  %v1170 = vmul.f32 %v1098, %v1149
  %v1171 = vmul.f32 %v1099, %v1151
  %v1172 = vmul.f32 %v1100, %v1153
  %v1173 = vmul.f32 %v1101, %v1155
  %v1174 = vmul.f32 %v1102, %v1157
  %v1175 = vmul.f32 %v1103, %v1159
  %1184 = vrot.lane.b32.xlu0 %v1168, 32
  %v1185 = vpop.permute.xlu0 %1184
  %1186 = vrot.lane.b32.xlu0 %v1169, 32
  %v1187 = vpop.permute.xlu0 %1186
  %1188 = vrot.lane.b32.xlu0 %v1170, 32
  %v1189 = vpop.permute.xlu0 %1188
  %1190 = vrot.lane.b32.xlu0 %v1171, 32
  %v1191 = vpop.permute.xlu0 %1190
  %1192 = vrot.lane.b32.xlu0 %v1172, 32
  %v1193 = vpop.permute.xlu0 %1192
  %1194 = vrot.lane.b32.xlu0 %v1173, 32
  %v1195 = vpop.permute.xlu0 %1194
  %1196 = vrot.lane.b32.xlu0 %v1174, 32
  %v1197 = vpop.permute.xlu0 %1196
  %1198 = vrot.lane.b32.xlu0 %v1175, 32
  %v1199 = vpop.permute.xlu0 %1198
  %v1208 = vadd.f32 %v1128, %v1185
  %v1209 = vadd.f32 %v1129, %v1187
  %v1210 = vadd.f32 %v1130, %v1189
  %v1211 = vadd.f32 %v1131, %v1191
  %v1212 = vadd.f32 %v1132, %v1193
  %v1213 = vadd.f32 %v1133, %v1195
  %v1214 = vadd.f32 %v1134, %v1197
  %v1215 = vadd.f32 %v1135, %v1199
  %v1216 = vtanh.pop %v1208
  %v1217 = vtanh.pop %v1209
  %v1218 = vtanh.pop %v1210
  %v1219 = vtanh.pop %v1211
  %v1220 = vtanh.pop %v1212
  %v1221 = vtanh.pop %v1213
  %v1222 = vtanh.pop %v1214
  %v1223 = vtanh.pop %v1215
  %1232 = vrot.lane.b32.xlu0 %v1216, 32
  %v1233 = vpop.permute.xlu0 %1232
  %1234 = vrot.lane.b32.xlu0 %v1217, 32
  %v1235 = vpop.permute.xlu0 %1234
  %1236 = vrot.lane.b32.xlu0 %v1218, 32
  %v1237 = vpop.permute.xlu0 %1236
  %1238 = vrot.lane.b32.xlu0 %v1219, 32
  %v1239 = vpop.permute.xlu0 %1238
  %1240 = vrot.lane.b32.xlu0 %v1220, 32
  %v1241 = vpop.permute.xlu0 %1240
  %1242 = vrot.lane.b32.xlu0 %v1221, 32
  %v1243 = vpop.permute.xlu0 %1242
  %1244 = vrot.lane.b32.xlu0 %v1222, 32
  %v1245 = vpop.permute.xlu0 %1244
  %1246 = vrot.lane.b32.xlu0 %v1223, 32
  %v1247 = vpop.permute.xlu0 %1246
  %v1256 = vmul.f32 %v1096, %v1233
  %v1257 = vmul.f32 %v1097, %v1235
  %v1258 = vmul.f32 %v1098, %v1237
  %v1259 = vmul.f32 %v1099, %v1239
  %v1260 = vmul.f32 %v1100, %v1241
  %v1261 = vmul.f32 %v1101, %v1243
  %v1262 = vmul.f32 %v1102, %v1245
  %v1263 = vmul.f32 %v1103, %v1247
  %s1264 = scalar_lea.vmem %s4, 3
  %v1265 = vld [vmem:[%s1264] sm:$0x1]
  %v1267 = vperm.slane %v1265, 0
  %1268 = vrot.lane.b32.xlu0 %v1267, 64
  %v1269 = vpop.permute.xlu0 %1268
  %v1271 = vmul.f32 %v1256, %v1269
  %v1272 = vmul.f32 %v1257, %v1269
  %v1273 = vmul.f32 %v1258, %v1269
  %v1274 = vmul.f32 %v1259, %v1269
  %v1275 = vmul.f32 %v1260, %v1269
  %v1276 = vmul.f32 %v1261, %v1269
  %v1277 = vmul.f32 %v1262, %v1269
  %v1278 = vmul.f32 %v1263, %v1269
  %v1287 = vrot.slane %v1271, 3
  %v1288 = vrot.slane %v1272, 3
  %v1289 = vrot.slane %v1273, 3
  %v1290 = vrot.slane %v1274, 3
  %v1291 = vrot.slane %v1275, 3
  %v1292 = vrot.slane %v1276, 3
  %v1293 = vrot.slane %v1277, 3
  %v1294 = vrot.slane %v1278, 3
  %v1303 = vadd.f32 %v983, %v1287
  %v1304 = vadd.f32 %v984, %v1288
  %v1305 = vadd.f32 %v985, %v1289
  %v1306 = vadd.f32 %v986, %v1290
  %v1307 = vadd.f32 %v987, %v1291
  %v1308 = vadd.f32 %v988, %v1292
  %v1309 = vadd.f32 %v989, %v1293
  %v1310 = vadd.f32 %v990, %v1294
  %v1311 = vpack.c.bf16 %v1256, %v1256
  %v1312 = vpack.c.bf16 %v1257, %v1257
  %v1313 = vpack.c.bf16 %v1258, %v1258
  %v1314 = vpack.c.bf16 %v1259, %v1259
  %v1315 = vpack.c.bf16 %v1260, %v1260
  %v1316 = vpack.c.bf16 %v1261, %v1261
  %v1317 = vpack.c.bf16 %v1262, %v1262
  %v1318 = vpack.c.bf16 %v1263, %v1263
  %v1327 = vunpack.c.l.b16 %v1311
  %v1328 = vunpack.c.l.b16 %v1312
  %v1329 = vunpack.c.l.b16 %v1313
  %v1330 = vunpack.c.l.b16 %v1314
  %v1331 = vunpack.c.l.b16 %v1315
  %v1332 = vunpack.c.l.b16 %v1316
  %v1333 = vunpack.c.l.b16 %v1317
  %v1334 = vunpack.c.l.b16 %v1318
  %v1335 = vrot.slane %v1327, 3
  %v1336 = vrot.slane %v1328, 2
  %v1337 = vsel %vm369, %v1336, %v1335
  %v1338 = vrot.slane %v1329, 1
  %v1339 = vsel %vm372, %v1338, %v1337
  %v1340 = vsel %vm375, %v1330, %v1339
  %v1341 = vrot.slane %v1331, 7
  %v1342 = vsel %vm378, %v1341, %v1340
  %v1343 = vrot.slane %v1332, 6
  %v1344 = vsel %vm381, %v1343, %v1342
  %v1345 = vrot.slane %v1333, 5
  %v1346 = vsel %vm384, %v1345, %v1344
  %v1347 = vrot.slane %v1334, 4
  %v1348 = vsel %vm387, %v1347, %v1346
  %v1349 = vpack.c.b16 %v1348, %v1348
  %1350 = vrot.lane.b32.xlu0 %v1349, 64
  %v1351 = vpop.permute.xlu0 %1350
  %v1353 = vsel %vm113, %v1351, 0
  %1355 = vmatpush.bf16.msra.mxu0 0
  %1356 = vmatpush.bf16.msra.mxu0 0
  %1357 = vmatpush.bf16.msra.mxu0 0
  %1358 = vmatpush.bf16.msra.mxu0 0
  %1359 = vmatpush.bf16.msra.mxu0 0
  %1360 = vmatpush.bf16.msra.mxu0 0
  %1361 = vmatpush.bf16.msra.mxu0 %v110
  %1362 = vmatpush.bf16.msra.mxu0 %v109
  %1363 = vmatmul.bf16.gmra.mxu0 %v1353
  %v1364 = vpop.f32.mrf.mxu0
  %v1365 = vadd.f32 0.0, %v1364
  %v1366 = vpop.f32.mrf.mxu0
  %1367 = vdwg.mxu0
  %v1369 = vrot.slane %v1365, 4
  %v1370 = vrot.slane %v1365, 5
  %v1371 = vrot.slane %v1365, 6
  %v1372 = vrot.slane %v1365, 7
  %v1373 = vrot.slane %v1365, 1
  %v1374 = vrot.slane %v1365, 2
  %v1375 = vrot.slane %v1365, 3
  %v1384 = vadd.f32 %v77, %v1369
  %v1385 = vadd.f32 %v79, %v1370
  %v1386 = vadd.f32 %v82, %v1371
  %v1387 = vadd.f32 %v84, %v1372
  %v1388 = vadd.f32 %v87, %v1365
  %v1389 = vadd.f32 %v89, %v1373
  %v1390 = vadd.f32 %v92, %v1374
  %v1391 = vadd.f32 %v94, %v1375
  %v1392 = vmul.f32 %v1384, %v99
  %v1393 = vmul.f32 %v1385, %v99
  %v1394 = vmul.f32 %v1386, %v99
  %v1395 = vmul.f32 %v1387, %v99
  %v1396 = vmul.f32 %v1388, %v99
  %v1397 = vmul.f32 %v1389, %v99
  %v1398 = vmul.f32 %v1390, %v99
  %v1399 = vmul.f32 %v1391, %v99
  %v1400 = vtanh.pop %v1392
  %v1401 = vtanh.pop %v1393
  %v1402 = vtanh.pop %v1394
  %v1403 = vtanh.pop %v1395
  %v1404 = vtanh.pop %v1396
  %v1405 = vtanh.pop %v1397
  %v1406 = vtanh.pop %v1398
  %v1407 = vtanh.pop %v1399
  %v1408 = vmul.f32 %v1400, %v99
  %v1409 = vmul.f32 %v1401, %v99
  %v1410 = vmul.f32 %v1402, %v99
  %v1411 = vmul.f32 %v1403, %v99
  %v1412 = vmul.f32 %v1404, %v99
  %v1413 = vmul.f32 %v1405, %v99
  %v1414 = vmul.f32 %v1406, %v99
  %v1415 = vmul.f32 %v1407, %v99
  %v1416 = vadd.f32 %v1408, %v100
  %v1417 = vadd.f32 %v1409, %v100
  %v1418 = vadd.f32 %v1410, %v100
  %v1419 = vadd.f32 %v1411, %v100
  %v1420 = vadd.f32 %v1412, %v100
  %v1421 = vadd.f32 %v1413, %v100
  %v1422 = vadd.f32 %v1414, %v100
  %v1423 = vadd.f32 %v1415, %v100
  %v1432 = vrot.slane %v1208, 7
  %v1433 = vrot.slane %v1209, 7
  %v1434 = vrot.slane %v1210, 7
  %v1435 = vrot.slane %v1211, 7
  %v1436 = vrot.slane %v1212, 7
  %v1437 = vrot.slane %v1213, 7
  %v1438 = vrot.slane %v1214, 7
  %v1439 = vrot.slane %v1215, 7
  %v1448 = vmul.f32 %v1416, %v1432
  %v1449 = vmul.f32 %v1417, %v1433
  %v1450 = vmul.f32 %v1418, %v1434
  %v1451 = vmul.f32 %v1419, %v1435
  %v1452 = vmul.f32 %v1420, %v1436
  %v1453 = vmul.f32 %v1421, %v1437
  %v1454 = vmul.f32 %v1422, %v1438
  %v1455 = vmul.f32 %v1423, %v1439
  %1464 = vrot.lane.b32.xlu0 %v1416, 32
  %v1465 = vpop.permute.xlu0 %1464
  %1466 = vrot.lane.b32.xlu0 %v1417, 32
  %v1467 = vpop.permute.xlu0 %1466
  %1468 = vrot.lane.b32.xlu0 %v1418, 32
  %v1469 = vpop.permute.xlu0 %1468
  %1470 = vrot.lane.b32.xlu0 %v1419, 32
  %v1471 = vpop.permute.xlu0 %1470
  %1472 = vrot.lane.b32.xlu0 %v1420, 32
  %v1473 = vpop.permute.xlu0 %1472
  %1474 = vrot.lane.b32.xlu0 %v1421, 32
  %v1475 = vpop.permute.xlu0 %1474
  %1476 = vrot.lane.b32.xlu0 %v1422, 32
  %v1477 = vpop.permute.xlu0 %1476
  %1478 = vrot.lane.b32.xlu0 %v1423, 32
  %v1479 = vpop.permute.xlu0 %1478
  %v1488 = vmul.f32 %v1416, %v1465
  %v1489 = vmul.f32 %v1417, %v1467
  %v1490 = vmul.f32 %v1418, %v1469
  %v1491 = vmul.f32 %v1419, %v1471
  %v1492 = vmul.f32 %v1420, %v1473
  %v1493 = vmul.f32 %v1421, %v1475
  %v1494 = vmul.f32 %v1422, %v1477
  %v1495 = vmul.f32 %v1423, %v1479
  %1504 = vrot.lane.b32.xlu0 %v1488, 32
  %v1505 = vpop.permute.xlu0 %1504
  %1506 = vrot.lane.b32.xlu0 %v1489, 32
  %v1507 = vpop.permute.xlu0 %1506
  %1508 = vrot.lane.b32.xlu0 %v1490, 32
  %v1509 = vpop.permute.xlu0 %1508
  %1510 = vrot.lane.b32.xlu0 %v1491, 32
  %v1511 = vpop.permute.xlu0 %1510
  %1512 = vrot.lane.b32.xlu0 %v1492, 32
  %v1513 = vpop.permute.xlu0 %1512
  %1514 = vrot.lane.b32.xlu0 %v1493, 32
  %v1515 = vpop.permute.xlu0 %1514
  %1516 = vrot.lane.b32.xlu0 %v1494, 32
  %v1517 = vpop.permute.xlu0 %1516
  %1518 = vrot.lane.b32.xlu0 %v1495, 32
  %v1519 = vpop.permute.xlu0 %1518
  %v1528 = vadd.f32 %v1448, %v1505
  %v1529 = vadd.f32 %v1449, %v1507
  %v1530 = vadd.f32 %v1450, %v1509
  %v1531 = vadd.f32 %v1451, %v1511
  %v1532 = vadd.f32 %v1452, %v1513
  %v1533 = vadd.f32 %v1453, %v1515
  %v1534 = vadd.f32 %v1454, %v1517
  %v1535 = vadd.f32 %v1455, %v1519
  %v1536 = vtanh.pop %v1528
  %v1537 = vtanh.pop %v1529
  %v1538 = vtanh.pop %v1530
  %v1539 = vtanh.pop %v1531
  %v1540 = vtanh.pop %v1532
  %v1541 = vtanh.pop %v1533
  %v1542 = vtanh.pop %v1534
  %v1543 = vtanh.pop %v1535
  %1552 = vrot.lane.b32.xlu0 %v1536, 32
  %v1553 = vpop.permute.xlu0 %1552
  %1554 = vrot.lane.b32.xlu0 %v1537, 32
  %v1555 = vpop.permute.xlu0 %1554
  %1556 = vrot.lane.b32.xlu0 %v1538, 32
  %v1557 = vpop.permute.xlu0 %1556
  %1558 = vrot.lane.b32.xlu0 %v1539, 32
  %v1559 = vpop.permute.xlu0 %1558
  %1560 = vrot.lane.b32.xlu0 %v1540, 32
  %v1561 = vpop.permute.xlu0 %1560
  %1562 = vrot.lane.b32.xlu0 %v1541, 32
  %v1563 = vpop.permute.xlu0 %1562
  %1564 = vrot.lane.b32.xlu0 %v1542, 32
  %v1565 = vpop.permute.xlu0 %1564
  %1566 = vrot.lane.b32.xlu0 %v1543, 32
  %v1567 = vpop.permute.xlu0 %1566
  %v1576 = vmul.f32 %v1416, %v1553
  %v1577 = vmul.f32 %v1417, %v1555
  %v1578 = vmul.f32 %v1418, %v1557
  %v1579 = vmul.f32 %v1419, %v1559
  %v1580 = vmul.f32 %v1420, %v1561
  %v1581 = vmul.f32 %v1421, %v1563
  %v1582 = vmul.f32 %v1422, %v1565
  %v1583 = vmul.f32 %v1423, %v1567
  %s1584 = scalar_lea.vmem %s4, 4
  %v1585 = vld [vmem:[%s1584] sm:$0x1]
  %v1587 = vperm.slane %v1585, 0
  %1588 = vrot.lane.b32.xlu0 %v1587, 64
  %v1589 = vpop.permute.xlu0 %1588
  %v1591 = vmul.f32 %v1576, %v1589
  %v1592 = vmul.f32 %v1577, %v1589
  %v1593 = vmul.f32 %v1578, %v1589
  %v1594 = vmul.f32 %v1579, %v1589
  %v1595 = vmul.f32 %v1580, %v1589
  %v1596 = vmul.f32 %v1581, %v1589
  %v1597 = vmul.f32 %v1582, %v1589
  %v1598 = vmul.f32 %v1583, %v1589
  %v1607 = vrot.slane %v1591, 4
  %v1608 = vrot.slane %v1592, 4
  %v1609 = vrot.slane %v1593, 4
  %v1610 = vrot.slane %v1594, 4
  %v1611 = vrot.slane %v1595, 4
  %v1612 = vrot.slane %v1596, 4
  %v1613 = vrot.slane %v1597, 4
  %v1614 = vrot.slane %v1598, 4
  %v1623 = vadd.f32 %v1303, %v1607
  %v1624 = vadd.f32 %v1304, %v1608
  %v1625 = vadd.f32 %v1305, %v1609
  %v1626 = vadd.f32 %v1306, %v1610
  %v1627 = vadd.f32 %v1307, %v1611
  %v1628 = vadd.f32 %v1308, %v1612
  %v1629 = vadd.f32 %v1309, %v1613
  %v1630 = vadd.f32 %v1310, %v1614
  %v1631 = vpack.c.bf16 %v1576, %v1576
  %v1632 = vpack.c.bf16 %v1577, %v1577
  %v1633 = vpack.c.bf16 %v1578, %v1578
  %v1634 = vpack.c.bf16 %v1579, %v1579
  %v1635 = vpack.c.bf16 %v1580, %v1580
  %v1636 = vpack.c.bf16 %v1581, %v1581
  %v1637 = vpack.c.bf16 %v1582, %v1582
  %v1638 = vpack.c.bf16 %v1583, %v1583
  %v1647 = vunpack.c.l.b16 %v1631
  %v1648 = vunpack.c.l.b16 %v1632
  %v1649 = vunpack.c.l.b16 %v1633
  %v1650 = vunpack.c.l.b16 %v1634
  %v1651 = vunpack.c.l.b16 %v1635
  %v1652 = vunpack.c.l.b16 %v1636
  %v1653 = vunpack.c.l.b16 %v1637
  %v1654 = vunpack.c.l.b16 %v1638
  %v1655 = vrot.slane %v1647, 4
  %v1656 = vrot.slane %v1648, 3
  %v1657 = vsel %vm369, %v1656, %v1655
  %v1658 = vrot.slane %v1649, 2
  %v1659 = vsel %vm372, %v1658, %v1657
  %v1660 = vrot.slane %v1650, 1
  %v1661 = vsel %vm375, %v1660, %v1659
  %v1662 = vsel %vm378, %v1651, %v1661
  %v1663 = vrot.slane %v1652, 7
  %v1664 = vsel %vm381, %v1663, %v1662
  %v1665 = vrot.slane %v1653, 6
  %v1666 = vsel %vm384, %v1665, %v1664
  %v1667 = vrot.slane %v1654, 5
  %v1668 = vsel %vm387, %v1667, %v1666
  %v1669 = vpack.c.b16 %v1668, %v1668
  %1670 = vrot.lane.b32.xlu0 %v1669, 64
  %v1671 = vpop.permute.xlu0 %1670
  %v1673 = vsel %vm113, %v1671, 0
  %1675 = vmatpush.bf16.msra.mxu0 0
  %1676 = vmatpush.bf16.msra.mxu0 0
  %1677 = vmatpush.bf16.msra.mxu0 0
  %1678 = vmatpush.bf16.msra.mxu0 0
  %1679 = vmatpush.bf16.msra.mxu0 0
  %1680 = vmatpush.bf16.msra.mxu0 0
  %1681 = vmatpush.bf16.msra.mxu0 %v110
  %1682 = vmatpush.bf16.msra.mxu0 %v109
  %1683 = vmatmul.bf16.gmra.mxu0 %v1673
  %v1684 = vpop.f32.mrf.mxu0
  %v1685 = vadd.f32 0.0, %v1684
  %v1686 = vpop.f32.mrf.mxu0
  %1687 = vdwg.mxu0
  %v1689 = vrot.slane %v1685, 3
  %v1690 = vrot.slane %v1685, 4
  %v1691 = vrot.slane %v1685, 5
  %v1692 = vrot.slane %v1685, 6
  %v1693 = vrot.slane %v1685, 7
  %v1694 = vrot.slane %v1685, 1
  %v1695 = vrot.slane %v1685, 2
  %v1704 = vadd.f32 %v77, %v1689
  %v1705 = vadd.f32 %v79, %v1690
  %v1706 = vadd.f32 %v82, %v1691
  %v1707 = vadd.f32 %v84, %v1692
  %v1708 = vadd.f32 %v87, %v1693
  %v1709 = vadd.f32 %v89, %v1685
  %v1710 = vadd.f32 %v92, %v1694
  %v1711 = vadd.f32 %v94, %v1695
  %v1712 = vmul.f32 %v1704, %v99
  %v1713 = vmul.f32 %v1705, %v99
  %v1714 = vmul.f32 %v1706, %v99
  %v1715 = vmul.f32 %v1707, %v99
  %v1716 = vmul.f32 %v1708, %v99
  %v1717 = vmul.f32 %v1709, %v99
  %v1718 = vmul.f32 %v1710, %v99
  %v1719 = vmul.f32 %v1711, %v99
  %v1720 = vtanh.pop %v1712
  %v1721 = vtanh.pop %v1713
  %v1722 = vtanh.pop %v1714
  %v1723 = vtanh.pop %v1715
  %v1724 = vtanh.pop %v1716
  %v1725 = vtanh.pop %v1717
  %v1726 = vtanh.pop %v1718
  %v1727 = vtanh.pop %v1719
  %v1728 = vmul.f32 %v1720, %v99
  %v1729 = vmul.f32 %v1721, %v99
  %v1730 = vmul.f32 %v1722, %v99
  %v1731 = vmul.f32 %v1723, %v99
  %v1732 = vmul.f32 %v1724, %v99
  %v1733 = vmul.f32 %v1725, %v99
  %v1734 = vmul.f32 %v1726, %v99
  %v1735 = vmul.f32 %v1727, %v99
  %v1736 = vadd.f32 %v1728, %v100
  %v1737 = vadd.f32 %v1729, %v100
  %v1738 = vadd.f32 %v1730, %v100
  %v1739 = vadd.f32 %v1731, %v100
  %v1740 = vadd.f32 %v1732, %v100
  %v1741 = vadd.f32 %v1733, %v100
  %v1742 = vadd.f32 %v1734, %v100
  %v1743 = vadd.f32 %v1735, %v100
  %v1752 = vrot.slane %v1528, 7
  %v1753 = vrot.slane %v1529, 7
  %v1754 = vrot.slane %v1530, 7
  %v1755 = vrot.slane %v1531, 7
  %v1756 = vrot.slane %v1532, 7
  %v1757 = vrot.slane %v1533, 7
  %v1758 = vrot.slane %v1534, 7
  %v1759 = vrot.slane %v1535, 7
  %v1768 = vmul.f32 %v1736, %v1752
  %v1769 = vmul.f32 %v1737, %v1753
  %v1770 = vmul.f32 %v1738, %v1754
  %v1771 = vmul.f32 %v1739, %v1755
  %v1772 = vmul.f32 %v1740, %v1756
  %v1773 = vmul.f32 %v1741, %v1757
  %v1774 = vmul.f32 %v1742, %v1758
  %v1775 = vmul.f32 %v1743, %v1759
  %1784 = vrot.lane.b32.xlu0 %v1736, 32
  %v1785 = vpop.permute.xlu0 %1784
  %1786 = vrot.lane.b32.xlu0 %v1737, 32
  %v1787 = vpop.permute.xlu0 %1786
  %1788 = vrot.lane.b32.xlu0 %v1738, 32
  %v1789 = vpop.permute.xlu0 %1788
  %1790 = vrot.lane.b32.xlu0 %v1739, 32
  %v1791 = vpop.permute.xlu0 %1790
  %1792 = vrot.lane.b32.xlu0 %v1740, 32
  %v1793 = vpop.permute.xlu0 %1792
  %1794 = vrot.lane.b32.xlu0 %v1741, 32
  %v1795 = vpop.permute.xlu0 %1794
  %1796 = vrot.lane.b32.xlu0 %v1742, 32
  %v1797 = vpop.permute.xlu0 %1796
  %1798 = vrot.lane.b32.xlu0 %v1743, 32
  %v1799 = vpop.permute.xlu0 %1798
  %v1808 = vmul.f32 %v1736, %v1785
  %v1809 = vmul.f32 %v1737, %v1787
  %v1810 = vmul.f32 %v1738, %v1789
  %v1811 = vmul.f32 %v1739, %v1791
  %v1812 = vmul.f32 %v1740, %v1793
  %v1813 = vmul.f32 %v1741, %v1795
  %v1814 = vmul.f32 %v1742, %v1797
  %v1815 = vmul.f32 %v1743, %v1799
  %1824 = vrot.lane.b32.xlu0 %v1808, 32
  %v1825 = vpop.permute.xlu0 %1824
  %1826 = vrot.lane.b32.xlu0 %v1809, 32
  %v1827 = vpop.permute.xlu0 %1826
  %1828 = vrot.lane.b32.xlu0 %v1810, 32
  %v1829 = vpop.permute.xlu0 %1828
  %1830 = vrot.lane.b32.xlu0 %v1811, 32
  %v1831 = vpop.permute.xlu0 %1830
  %1832 = vrot.lane.b32.xlu0 %v1812, 32
  %v1833 = vpop.permute.xlu0 %1832
  %1834 = vrot.lane.b32.xlu0 %v1813, 32
  %v1835 = vpop.permute.xlu0 %1834
  %1836 = vrot.lane.b32.xlu0 %v1814, 32
  %v1837 = vpop.permute.xlu0 %1836
  %1838 = vrot.lane.b32.xlu0 %v1815, 32
  %v1839 = vpop.permute.xlu0 %1838
  %v1848 = vadd.f32 %v1768, %v1825
  %v1849 = vadd.f32 %v1769, %v1827
  %v1850 = vadd.f32 %v1770, %v1829
  %v1851 = vadd.f32 %v1771, %v1831
  %v1852 = vadd.f32 %v1772, %v1833
  %v1853 = vadd.f32 %v1773, %v1835
  %v1854 = vadd.f32 %v1774, %v1837
  %v1855 = vadd.f32 %v1775, %v1839
  %v1856 = vtanh.pop %v1848
  %v1857 = vtanh.pop %v1849
  %v1858 = vtanh.pop %v1850
  %v1859 = vtanh.pop %v1851
  %v1860 = vtanh.pop %v1852
  %v1861 = vtanh.pop %v1853
  %v1862 = vtanh.pop %v1854
  %v1863 = vtanh.pop %v1855
  %1872 = vrot.lane.b32.xlu0 %v1856, 32
  %v1873 = vpop.permute.xlu0 %1872
  %1874 = vrot.lane.b32.xlu0 %v1857, 32
  %v1875 = vpop.permute.xlu0 %1874
  %1876 = vrot.lane.b32.xlu0 %v1858, 32
  %v1877 = vpop.permute.xlu0 %1876
  %1878 = vrot.lane.b32.xlu0 %v1859, 32
  %v1879 = vpop.permute.xlu0 %1878
  %1880 = vrot.lane.b32.xlu0 %v1860, 32
  %v1881 = vpop.permute.xlu0 %1880
  %1882 = vrot.lane.b32.xlu0 %v1861, 32
  %v1883 = vpop.permute.xlu0 %1882
  %1884 = vrot.lane.b32.xlu0 %v1862, 32
  %v1885 = vpop.permute.xlu0 %1884
  %1886 = vrot.lane.b32.xlu0 %v1863, 32
  %v1887 = vpop.permute.xlu0 %1886
  %v1896 = vmul.f32 %v1736, %v1873
  %v1897 = vmul.f32 %v1737, %v1875
  %v1898 = vmul.f32 %v1738, %v1877
  %v1899 = vmul.f32 %v1739, %v1879
  %v1900 = vmul.f32 %v1740, %v1881
  %v1901 = vmul.f32 %v1741, %v1883
  %v1902 = vmul.f32 %v1742, %v1885
  %v1903 = vmul.f32 %v1743, %v1887
  %s1904 = scalar_lea.vmem %s4, 5
  %v1905 = vld [vmem:[%s1904] sm:$0x1]
  %v1907 = vperm.slane %v1905, 0
  %1908 = vrot.lane.b32.xlu0 %v1907, 64
  %v1909 = vpop.permute.xlu0 %1908
  %v1911 = vmul.f32 %v1896, %v1909
  %v1912 = vmul.f32 %v1897, %v1909
  %v1913 = vmul.f32 %v1898, %v1909
  %v1914 = vmul.f32 %v1899, %v1909
  %v1915 = vmul.f32 %v1900, %v1909
  %v1916 = vmul.f32 %v1901, %v1909
  %v1917 = vmul.f32 %v1902, %v1909
  %v1918 = vmul.f32 %v1903, %v1909
  %v1927 = vrot.slane %v1911, 5
  %v1928 = vrot.slane %v1912, 5
  %v1929 = vrot.slane %v1913, 5
  %v1930 = vrot.slane %v1914, 5
  %v1931 = vrot.slane %v1915, 5
  %v1932 = vrot.slane %v1916, 5
  %v1933 = vrot.slane %v1917, 5
  %v1934 = vrot.slane %v1918, 5
  %v1943 = vadd.f32 %v1623, %v1927
  %v1944 = vadd.f32 %v1624, %v1928
  %v1945 = vadd.f32 %v1625, %v1929
  %v1946 = vadd.f32 %v1626, %v1930
  %v1947 = vadd.f32 %v1627, %v1931
  %v1948 = vadd.f32 %v1628, %v1932
  %v1949 = vadd.f32 %v1629, %v1933
  %v1950 = vadd.f32 %v1630, %v1934
  %v1951 = vpack.c.bf16 %v1896, %v1896
  %v1952 = vpack.c.bf16 %v1897, %v1897
  %v1953 = vpack.c.bf16 %v1898, %v1898
  %v1954 = vpack.c.bf16 %v1899, %v1899
  %v1955 = vpack.c.bf16 %v1900, %v1900
  %v1956 = vpack.c.bf16 %v1901, %v1901
  %v1957 = vpack.c.bf16 %v1902, %v1902
  %v1958 = vpack.c.bf16 %v1903, %v1903
  %v1967 = vunpack.c.l.b16 %v1951
  %v1968 = vunpack.c.l.b16 %v1952
  %v1969 = vunpack.c.l.b16 %v1953
  %v1970 = vunpack.c.l.b16 %v1954
  %v1971 = vunpack.c.l.b16 %v1955
  %v1972 = vunpack.c.l.b16 %v1956
  %v1973 = vunpack.c.l.b16 %v1957
  %v1974 = vunpack.c.l.b16 %v1958
  %v1975 = vrot.slane %v1967, 5
  %v1976 = vrot.slane %v1968, 4
  %v1977 = vsel %vm369, %v1976, %v1975
  %v1978 = vrot.slane %v1969, 3
  %v1979 = vsel %vm372, %v1978, %v1977
  %v1980 = vrot.slane %v1970, 2
  %v1981 = vsel %vm375, %v1980, %v1979
  %v1982 = vrot.slane %v1971, 1
  %v1983 = vsel %vm378, %v1982, %v1981
  %v1984 = vsel %vm381, %v1972, %v1983
  %v1985 = vrot.slane %v1973, 7
  %v1986 = vsel %vm384, %v1985, %v1984
  %v1987 = vrot.slane %v1974, 6
  %v1988 = vsel %vm387, %v1987, %v1986
  %v1989 = vpack.c.b16 %v1988, %v1988
  %1990 = vrot.lane.b32.xlu0 %v1989, 64
  %v1991 = vpop.permute.xlu0 %1990
  %v1993 = vsel %vm113, %v1991, 0
  %1995 = vmatpush.bf16.msra.mxu0 0
  %1996 = vmatpush.bf16.msra.mxu0 0
  %1997 = vmatpush.bf16.msra.mxu0 0
  %1998 = vmatpush.bf16.msra.mxu0 0
  %1999 = vmatpush.bf16.msra.mxu0 0
  %2000 = vmatpush.bf16.msra.mxu0 0
  %2001 = vmatpush.bf16.msra.mxu0 %v110
  %2002 = vmatpush.bf16.msra.mxu0 %v109
  %2003 = vmatmul.bf16.gmra.mxu0 %v1993
  %v2004 = vpop.f32.mrf.mxu0
  %v2005 = vadd.f32 0.0, %v2004
  %v2006 = vpop.f32.mrf.mxu0
  %2007 = vdwg.mxu0
  %v2009 = vrot.slane %v2005, 2
  %v2010 = vrot.slane %v2005, 3
  %v2011 = vrot.slane %v2005, 4
  %v2012 = vrot.slane %v2005, 5
  %v2013 = vrot.slane %v2005, 6
  %v2014 = vrot.slane %v2005, 7
  %v2015 = vrot.slane %v2005, 1
  %v2024 = vadd.f32 %v77, %v2009
  %v2025 = vadd.f32 %v79, %v2010
  %v2026 = vadd.f32 %v82, %v2011
  %v2027 = vadd.f32 %v84, %v2012
  %v2028 = vadd.f32 %v87, %v2013
  %v2029 = vadd.f32 %v89, %v2014
  %v2030 = vadd.f32 %v92, %v2005
  %v2031 = vadd.f32 %v94, %v2015
  %v2032 = vmul.f32 %v2024, %v99
  %v2033 = vmul.f32 %v2025, %v99
  %v2034 = vmul.f32 %v2026, %v99
  %v2035 = vmul.f32 %v2027, %v99
  %v2036 = vmul.f32 %v2028, %v99
  %v2037 = vmul.f32 %v2029, %v99
  %v2038 = vmul.f32 %v2030, %v99
  %v2039 = vmul.f32 %v2031, %v99
  %v2040 = vtanh.pop %v2032
  %v2041 = vtanh.pop %v2033
  %v2042 = vtanh.pop %v2034
  %v2043 = vtanh.pop %v2035
  %v2044 = vtanh.pop %v2036
  %v2045 = vtanh.pop %v2037
  %v2046 = vtanh.pop %v2038
  %v2047 = vtanh.pop %v2039
  %v2048 = vmul.f32 %v2040, %v99
  %v2049 = vmul.f32 %v2041, %v99
  %v2050 = vmul.f32 %v2042, %v99
  %v2051 = vmul.f32 %v2043, %v99
  %v2052 = vmul.f32 %v2044, %v99
  %v2053 = vmul.f32 %v2045, %v99
  %v2054 = vmul.f32 %v2046, %v99
  %v2055 = vmul.f32 %v2047, %v99
  %v2056 = vadd.f32 %v2048, %v100
  %v2057 = vadd.f32 %v2049, %v100
  %v2058 = vadd.f32 %v2050, %v100
  %v2059 = vadd.f32 %v2051, %v100
  %v2060 = vadd.f32 %v2052, %v100
  %v2061 = vadd.f32 %v2053, %v100
  %v2062 = vadd.f32 %v2054, %v100
  %v2063 = vadd.f32 %v2055, %v100
  %v2072 = vrot.slane %v1848, 7
  %v2073 = vrot.slane %v1849, 7
  %v2074 = vrot.slane %v1850, 7
  %v2075 = vrot.slane %v1851, 7
  %v2076 = vrot.slane %v1852, 7
  %v2077 = vrot.slane %v1853, 7
  %v2078 = vrot.slane %v1854, 7
  %v2079 = vrot.slane %v1855, 7
  %v2088 = vmul.f32 %v2056, %v2072
  %v2089 = vmul.f32 %v2057, %v2073
  %v2090 = vmul.f32 %v2058, %v2074
  %v2091 = vmul.f32 %v2059, %v2075
  %v2092 = vmul.f32 %v2060, %v2076
  %v2093 = vmul.f32 %v2061, %v2077
  %v2094 = vmul.f32 %v2062, %v2078
  %v2095 = vmul.f32 %v2063, %v2079
  %2104 = vrot.lane.b32.xlu0 %v2056, 32
  %v2105 = vpop.permute.xlu0 %2104
  %2106 = vrot.lane.b32.xlu0 %v2057, 32
  %v2107 = vpop.permute.xlu0 %2106
  %2108 = vrot.lane.b32.xlu0 %v2058, 32
  %v2109 = vpop.permute.xlu0 %2108
  %2110 = vrot.lane.b32.xlu0 %v2059, 32
  %v2111 = vpop.permute.xlu0 %2110
  %2112 = vrot.lane.b32.xlu0 %v2060, 32
  %v2113 = vpop.permute.xlu0 %2112
  %2114 = vrot.lane.b32.xlu0 %v2061, 32
  %v2115 = vpop.permute.xlu0 %2114
  %2116 = vrot.lane.b32.xlu0 %v2062, 32
  %v2117 = vpop.permute.xlu0 %2116
  %2118 = vrot.lane.b32.xlu0 %v2063, 32
  %v2119 = vpop.permute.xlu0 %2118
  %v2128 = vmul.f32 %v2056, %v2105
  %v2129 = vmul.f32 %v2057, %v2107
  %v2130 = vmul.f32 %v2058, %v2109
  %v2131 = vmul.f32 %v2059, %v2111
  %v2132 = vmul.f32 %v2060, %v2113
  %v2133 = vmul.f32 %v2061, %v2115
  %v2134 = vmul.f32 %v2062, %v2117
  %v2135 = vmul.f32 %v2063, %v2119
  %2144 = vrot.lane.b32.xlu0 %v2128, 32
  %v2145 = vpop.permute.xlu0 %2144
  %2146 = vrot.lane.b32.xlu0 %v2129, 32
  %v2147 = vpop.permute.xlu0 %2146
  %2148 = vrot.lane.b32.xlu0 %v2130, 32
  %v2149 = vpop.permute.xlu0 %2148
  %2150 = vrot.lane.b32.xlu0 %v2131, 32
  %v2151 = vpop.permute.xlu0 %2150
  %2152 = vrot.lane.b32.xlu0 %v2132, 32
  %v2153 = vpop.permute.xlu0 %2152
  %2154 = vrot.lane.b32.xlu0 %v2133, 32
  %v2155 = vpop.permute.xlu0 %2154
  %2156 = vrot.lane.b32.xlu0 %v2134, 32
  %v2157 = vpop.permute.xlu0 %2156
  %2158 = vrot.lane.b32.xlu0 %v2135, 32
  %v2159 = vpop.permute.xlu0 %2158
  %v2168 = vadd.f32 %v2088, %v2145
  %v2169 = vadd.f32 %v2089, %v2147
  %v2170 = vadd.f32 %v2090, %v2149
  %v2171 = vadd.f32 %v2091, %v2151
  %v2172 = vadd.f32 %v2092, %v2153
  %v2173 = vadd.f32 %v2093, %v2155
  %v2174 = vadd.f32 %v2094, %v2157
  %v2175 = vadd.f32 %v2095, %v2159
  %v2176 = vtanh.pop %v2168
  %v2177 = vtanh.pop %v2169
  %v2178 = vtanh.pop %v2170
  %v2179 = vtanh.pop %v2171
  %v2180 = vtanh.pop %v2172
  %v2181 = vtanh.pop %v2173
  %v2182 = vtanh.pop %v2174
  %v2183 = vtanh.pop %v2175
  %2192 = vrot.lane.b32.xlu0 %v2176, 32
  %v2193 = vpop.permute.xlu0 %2192
  %2194 = vrot.lane.b32.xlu0 %v2177, 32
  %v2195 = vpop.permute.xlu0 %2194
  %2196 = vrot.lane.b32.xlu0 %v2178, 32
  %v2197 = vpop.permute.xlu0 %2196
  %2198 = vrot.lane.b32.xlu0 %v2179, 32
  %v2199 = vpop.permute.xlu0 %2198
  %2200 = vrot.lane.b32.xlu0 %v2180, 32
  %v2201 = vpop.permute.xlu0 %2200
  %2202 = vrot.lane.b32.xlu0 %v2181, 32
  %v2203 = vpop.permute.xlu0 %2202
  %2204 = vrot.lane.b32.xlu0 %v2182, 32
  %v2205 = vpop.permute.xlu0 %2204
  %2206 = vrot.lane.b32.xlu0 %v2183, 32
  %v2207 = vpop.permute.xlu0 %2206
  %v2216 = vmul.f32 %v2056, %v2193
  %v2217 = vmul.f32 %v2057, %v2195
  %v2218 = vmul.f32 %v2058, %v2197
  %v2219 = vmul.f32 %v2059, %v2199
  %v2220 = vmul.f32 %v2060, %v2201
  %v2221 = vmul.f32 %v2061, %v2203
  %v2222 = vmul.f32 %v2062, %v2205
  %v2223 = vmul.f32 %v2063, %v2207
  %s2224 = scalar_lea.vmem %s4, 6
  %v2225 = vld [vmem:[%s2224] sm:$0x1]
  %v2227 = vperm.slane %v2225, 0
  %2228 = vrot.lane.b32.xlu0 %v2227, 64
  %v2229 = vpop.permute.xlu0 %2228
  %v2231 = vmul.f32 %v2216, %v2229
  %v2232 = vmul.f32 %v2217, %v2229
  %v2233 = vmul.f32 %v2218, %v2229
  %v2234 = vmul.f32 %v2219, %v2229
  %v2235 = vmul.f32 %v2220, %v2229
  %v2236 = vmul.f32 %v2221, %v2229
  %v2237 = vmul.f32 %v2222, %v2229
  %v2238 = vmul.f32 %v2223, %v2229
  %v2247 = vrot.slane %v2231, 6
  %v2248 = vrot.slane %v2232, 6
  %v2249 = vrot.slane %v2233, 6
  %v2250 = vrot.slane %v2234, 6
  %v2251 = vrot.slane %v2235, 6
  %v2252 = vrot.slane %v2236, 6
  %v2253 = vrot.slane %v2237, 6
  %v2254 = vrot.slane %v2238, 6
  %v2263 = vadd.f32 %v1943, %v2247
  %v2264 = vadd.f32 %v1944, %v2248
  %v2265 = vadd.f32 %v1945, %v2249
  %v2266 = vadd.f32 %v1946, %v2250
  %v2267 = vadd.f32 %v1947, %v2251
  %v2268 = vadd.f32 %v1948, %v2252
  %v2269 = vadd.f32 %v1949, %v2253
  %v2270 = vadd.f32 %v1950, %v2254
  %v2271 = vpack.c.bf16 %v2216, %v2216
  %v2272 = vpack.c.bf16 %v2217, %v2217
  %v2273 = vpack.c.bf16 %v2218, %v2218
  %v2274 = vpack.c.bf16 %v2219, %v2219
  %v2275 = vpack.c.bf16 %v2220, %v2220
  %v2276 = vpack.c.bf16 %v2221, %v2221
  %v2277 = vpack.c.bf16 %v2222, %v2222
  %v2278 = vpack.c.bf16 %v2223, %v2223
  %v2287 = vunpack.c.l.b16 %v2271
  %v2288 = vunpack.c.l.b16 %v2272
  %v2289 = vunpack.c.l.b16 %v2273
  %v2290 = vunpack.c.l.b16 %v2274
  %v2291 = vunpack.c.l.b16 %v2275
  %v2292 = vunpack.c.l.b16 %v2276
  %v2293 = vunpack.c.l.b16 %v2277
  %v2294 = vunpack.c.l.b16 %v2278
  %v2295 = vrot.slane %v2287, 6
  %v2296 = vrot.slane %v2288, 5
  %v2297 = vsel %vm369, %v2296, %v2295
  %v2298 = vrot.slane %v2289, 4
  %v2299 = vsel %vm372, %v2298, %v2297
  %v2300 = vrot.slane %v2290, 3
  %v2301 = vsel %vm375, %v2300, %v2299
  %v2302 = vrot.slane %v2291, 2
  %v2303 = vsel %vm378, %v2302, %v2301
  %v2304 = vrot.slane %v2292, 1
  %v2305 = vsel %vm381, %v2304, %v2303
  %v2306 = vsel %vm384, %v2293, %v2305
  %v2307 = vrot.slane %v2294, 7
  %v2308 = vsel %vm387, %v2307, %v2306
  %v2309 = vpack.c.b16 %v2308, %v2308
  %2310 = vrot.lane.b32.xlu0 %v2309, 64
  %v2311 = vpop.permute.xlu0 %2310
  %v2313 = vsel %vm113, %v2311, 0
  %2315 = vmatpush.bf16.msra.mxu0 0
  %2316 = vmatpush.bf16.msra.mxu0 0
  %2317 = vmatpush.bf16.msra.mxu0 0
  %2318 = vmatpush.bf16.msra.mxu0 0
  %2319 = vmatpush.bf16.msra.mxu0 0
  %2320 = vmatpush.bf16.msra.mxu0 0
  %2321 = vmatpush.bf16.msra.mxu0 %v110
  %2322 = vmatpush.bf16.msra.mxu0 %v109
  %2323 = vmatmul.bf16.gmra.mxu0 %v2313
  %v2324 = vpop.f32.mrf.mxu0
  %v2325 = vadd.f32 0.0, %v2324
  %v2326 = vpop.f32.mrf.mxu0
  %2327 = vdwg.mxu0
  %v2329 = vrot.slane %v2325, 1
  %v2330 = vrot.slane %v2325, 2
  %v2331 = vrot.slane %v2325, 3
  %v2332 = vrot.slane %v2325, 4
  %v2333 = vrot.slane %v2325, 5
  %v2334 = vrot.slane %v2325, 6
  %v2335 = vrot.slane %v2325, 7
  %v2344 = vadd.f32 %v77, %v2329
  %v2345 = vadd.f32 %v79, %v2330
  %v2346 = vadd.f32 %v82, %v2331
  %v2347 = vadd.f32 %v84, %v2332
  %v2348 = vadd.f32 %v87, %v2333
  %v2349 = vadd.f32 %v89, %v2334
  %v2350 = vadd.f32 %v92, %v2335
  %v2351 = vadd.f32 %v94, %v2325
  %v2352 = vmul.f32 %v2344, %v99
  %v2353 = vmul.f32 %v2345, %v99
  %v2354 = vmul.f32 %v2346, %v99
  %v2355 = vmul.f32 %v2347, %v99
  %v2356 = vmul.f32 %v2348, %v99
  %v2357 = vmul.f32 %v2349, %v99
  %v2358 = vmul.f32 %v2350, %v99
  %v2359 = vmul.f32 %v2351, %v99
  %v2360 = vtanh.pop %v2352
  %v2361 = vtanh.pop %v2353
  %v2362 = vtanh.pop %v2354
  %v2363 = vtanh.pop %v2355
  %v2364 = vtanh.pop %v2356
  %v2365 = vtanh.pop %v2357
  %v2366 = vtanh.pop %v2358
  %v2367 = vtanh.pop %v2359
  %v2368 = vmul.f32 %v2360, %v99
  %v2369 = vmul.f32 %v2361, %v99
  %v2370 = vmul.f32 %v2362, %v99
  %v2371 = vmul.f32 %v2363, %v99
  %v2372 = vmul.f32 %v2364, %v99
  %v2373 = vmul.f32 %v2365, %v99
  %v2374 = vmul.f32 %v2366, %v99
  %v2375 = vmul.f32 %v2367, %v99
  %v2376 = vadd.f32 %v2368, %v100
  %v2377 = vadd.f32 %v2369, %v100
  %v2378 = vadd.f32 %v2370, %v100
  %v2379 = vadd.f32 %v2371, %v100
  %v2380 = vadd.f32 %v2372, %v100
  %v2381 = vadd.f32 %v2373, %v100
  %v2382 = vadd.f32 %v2374, %v100
  %v2383 = vadd.f32 %v2375, %v100
  %v2392 = vrot.slane %v2168, 7
  %v2393 = vrot.slane %v2169, 7
  %v2394 = vrot.slane %v2170, 7
  %v2395 = vrot.slane %v2171, 7
  %v2396 = vrot.slane %v2172, 7
  %v2397 = vrot.slane %v2173, 7
  %v2398 = vrot.slane %v2174, 7
  %v2399 = vrot.slane %v2175, 7
  %v2408 = vmul.f32 %v2376, %v2392
  %v2409 = vmul.f32 %v2377, %v2393
  %v2410 = vmul.f32 %v2378, %v2394
  %v2411 = vmul.f32 %v2379, %v2395
  %v2412 = vmul.f32 %v2380, %v2396
  %v2413 = vmul.f32 %v2381, %v2397
  %v2414 = vmul.f32 %v2382, %v2398
  %v2415 = vmul.f32 %v2383, %v2399
  %2424 = vrot.lane.b32.xlu0 %v2376, 32
  %v2425 = vpop.permute.xlu0 %2424
  %2426 = vrot.lane.b32.xlu0 %v2377, 32
  %v2427 = vpop.permute.xlu0 %2426
  %2428 = vrot.lane.b32.xlu0 %v2378, 32
  %v2429 = vpop.permute.xlu0 %2428
  %2430 = vrot.lane.b32.xlu0 %v2379, 32
  %v2431 = vpop.permute.xlu0 %2430
  %2432 = vrot.lane.b32.xlu0 %v2380, 32
  %v2433 = vpop.permute.xlu0 %2432
  %2434 = vrot.lane.b32.xlu0 %v2381, 32
  %v2435 = vpop.permute.xlu0 %2434
  %2436 = vrot.lane.b32.xlu0 %v2382, 32
  %v2437 = vpop.permute.xlu0 %2436
  %2438 = vrot.lane.b32.xlu0 %v2383, 32
  %v2439 = vpop.permute.xlu0 %2438
  %v2448 = vmul.f32 %v2376, %v2425
  %v2449 = vmul.f32 %v2377, %v2427
  %v2450 = vmul.f32 %v2378, %v2429
  %v2451 = vmul.f32 %v2379, %v2431
  %v2452 = vmul.f32 %v2380, %v2433
  %v2453 = vmul.f32 %v2381, %v2435
  %v2454 = vmul.f32 %v2382, %v2437
  %v2455 = vmul.f32 %v2383, %v2439
  %2464 = vrot.lane.b32.xlu0 %v2448, 32
  %v2465 = vpop.permute.xlu0 %2464
  %2466 = vrot.lane.b32.xlu0 %v2449, 32
  %v2467 = vpop.permute.xlu0 %2466
  %2468 = vrot.lane.b32.xlu0 %v2450, 32
  %v2469 = vpop.permute.xlu0 %2468
  %2470 = vrot.lane.b32.xlu0 %v2451, 32
  %v2471 = vpop.permute.xlu0 %2470
  %2472 = vrot.lane.b32.xlu0 %v2452, 32
  %v2473 = vpop.permute.xlu0 %2472
  %2474 = vrot.lane.b32.xlu0 %v2453, 32
  %v2475 = vpop.permute.xlu0 %2474
  %2476 = vrot.lane.b32.xlu0 %v2454, 32
  %v2477 = vpop.permute.xlu0 %2476
  %2478 = vrot.lane.b32.xlu0 %v2455, 32
  %v2479 = vpop.permute.xlu0 %2478
  %v2488 = vadd.f32 %v2408, %v2465
  %v2489 = vadd.f32 %v2409, %v2467
  %v2490 = vadd.f32 %v2410, %v2469
  %v2491 = vadd.f32 %v2411, %v2471
  %v2492 = vadd.f32 %v2412, %v2473
  %v2493 = vadd.f32 %v2413, %v2475
  %v2494 = vadd.f32 %v2414, %v2477
  %v2495 = vadd.f32 %v2415, %v2479
  %v2496 = vtanh.pop %v2488
  %v2497 = vtanh.pop %v2489
  %v2498 = vtanh.pop %v2490
  %v2499 = vtanh.pop %v2491
  %v2500 = vtanh.pop %v2492
  %v2501 = vtanh.pop %v2493
  %v2502 = vtanh.pop %v2494
  %v2503 = vtanh.pop %v2495
  %2512 = vrot.lane.b32.xlu0 %v2496, 32
  %v2513 = vpop.permute.xlu0 %2512
  %2514 = vrot.lane.b32.xlu0 %v2497, 32
  %v2515 = vpop.permute.xlu0 %2514
  %2516 = vrot.lane.b32.xlu0 %v2498, 32
  %v2517 = vpop.permute.xlu0 %2516
  %2518 = vrot.lane.b32.xlu0 %v2499, 32
  %v2519 = vpop.permute.xlu0 %2518
  %2520 = vrot.lane.b32.xlu0 %v2500, 32
  %v2521 = vpop.permute.xlu0 %2520
  %2522 = vrot.lane.b32.xlu0 %v2501, 32
  %v2523 = vpop.permute.xlu0 %2522
  %2524 = vrot.lane.b32.xlu0 %v2502, 32
  %v2525 = vpop.permute.xlu0 %2524
  %2526 = vrot.lane.b32.xlu0 %v2503, 32
  %v2527 = vpop.permute.xlu0 %2526
  %v2536 = vmul.f32 %v2376, %v2513
  %v2537 = vmul.f32 %v2377, %v2515
  %v2538 = vmul.f32 %v2378, %v2517
  %v2539 = vmul.f32 %v2379, %v2519
  %v2540 = vmul.f32 %v2380, %v2521
  %v2541 = vmul.f32 %v2381, %v2523
  %v2542 = vmul.f32 %v2382, %v2525
  %v2543 = vmul.f32 %v2383, %v2527
  %s2544 = scalar_lea.vmem %s4, 7
  %v2545 = vld [vmem:[%s2544] sm:$0x1]
  %v2547 = vperm.slane %v2545, 0
  %2548 = vrot.lane.b32.xlu0 %v2547, 64
  %v2549 = vpop.permute.xlu0 %2548
  %v2551 = vmul.f32 %v2536, %v2549
  %v2552 = vmul.f32 %v2537, %v2549
  %v2553 = vmul.f32 %v2538, %v2549
  %v2554 = vmul.f32 %v2539, %v2549
  %v2555 = vmul.f32 %v2540, %v2549
  %v2556 = vmul.f32 %v2541, %v2549
  %v2557 = vmul.f32 %v2542, %v2549
  %v2558 = vmul.f32 %v2543, %v2549
  %v2567 = vrot.slane %v2551, 7
  %v2568 = vrot.slane %v2552, 7
  %v2569 = vrot.slane %v2553, 7
  %v2570 = vrot.slane %v2554, 7
  %v2571 = vrot.slane %v2555, 7
  %v2572 = vrot.slane %v2556, 7
  %v2573 = vrot.slane %v2557, 7
  %v2574 = vrot.slane %v2558, 7
  %v2583 = vadd.f32 %v2263, %v2567
  %v2584 = vadd.f32 %v2264, %v2568
  %v2585 = vadd.f32 %v2265, %v2569
  %v2586 = vadd.f32 %v2266, %v2570
  %v2587 = vadd.f32 %v2267, %v2571
  %v2588 = vadd.f32 %v2268, %v2572
  %v2589 = vadd.f32 %v2269, %v2573
  %v2590 = vadd.f32 %v2270, %v2574
  %v2599 = vrot.slane %v2584, 7
  %v2600 = vsel %vm369, %v2599, %v2583
  %v2601 = vrot.slane %v2585, 6
  %v2602 = vsel %vm372, %v2601, %v2600
  %v2603 = vrot.slane %v2586, 5
  %v2604 = vsel %vm375, %v2603, %v2602
  %v2605 = vrot.slane %v2587, 4
  %v2606 = vsel %vm378, %v2605, %v2604
  %v2607 = vrot.slane %v2588, 3
  %v2608 = vsel %vm381, %v2607, %v2606
  %v2609 = vrot.slane %v2589, 2
  %v2610 = vsel %vm384, %v2609, %v2608
  %v2611 = vrot.slane %v2590, 1
  %v2612 = vsel %vm387, %v2611, %v2610
  %2613 = vrot.lane.b32.xlu0 %v2612, 64
  %v2614 = vpop.permute.xlu0 %2613
  %v2616 = vsel %vm113, %v2614, 0.0
  %2617 = vadd.xlane.f32.xlu0 %v2616
  %v2618 = vpop.xlane.xlu0 %2617
  %v2619 = vld [vmem:[#allocation2] sm:$0x1]
  %v2621 = vperm.slane %v2619, 0
  %v2623 = vadd.f32 %v2618, %v2621
  %vm2624 = vcmask 7168
  %2625 = vst.msk [vmem:[%s6] sm:$0xff] %vm2624, %v2623
  // Predicated region
  $region26: #{tpu_custom_call.1} parent=0 // pred_check
    _
  $region27: #{tpu_custom_call.1} parent=0 // pred_check_branch
    %2627 = sbr.rel (0) target = $region29
  $region28: #{tpu_custom_call.1} parent=0 // pred_region
    _
  $region29: #{tpu_custom_call.1} parent=0 // pred_fallthru
    _
  // Predicated region
  $region30: #{tpu_custom_call.1} parent=0 // pred_check
    _
  $region31: #{tpu_custom_call.1} parent=0 // pred_check_branch
    %2629 = sbr.rel (0) target = $region33
  $region32: #{tpu_custom_call.1} parent=0 // pred_region
    _
  $region33: #{tpu_custom_call.1} parent=0 // pred_fallthru
    _

</llo_original>
